<compile_context>
chip_gen: v7x
topology: tpu7x:2x2x1
jax: 0.10.0
libtpu: 0.0.40
codegen_flags: <defaults>
</compile_context>

<pallas_src>
import functools

import jax
import jax.numpy as jnp
from jax import lax
from jax.experimental import pallas as pl
from jax.experimental.pallas import tpu as pltpu

# ---------------------------------------------------------------------------
# Problem configuration (TorchModel / ConvBlockModel __init__ defaults)
# ---------------------------------------------------------------------------
NDIMS = 2                       # 1 spatial dim + time
NDIMS_SPATIAL = NDIMS - 1       # initial_condition is provided -> ndims - 1
NPARAMS = 0
TOTAL = NDIMS + NPARAMS
F1, F2, F_OUT = 20, 30, 1       # features=(20, 30, 1), layout='fafaf'
LOWER, UPPER = 0.0, 1.0         # domain=(0, 1) replicated per dim
T0 = LOWER                      # lower limit of the time axis
BC = 0.0                        # constant Dirichlet boundary value
N_POINTS = 1000                 # demo batch (exercises padding + 2-step grid)

# Tiling / packing constants
LANE_GRANULE = 256              # keep matmul rhs lane width a multiple of 256 (v6e/v7x MXU)
TILE_CAP = 8192                 # lanes per grid step (VMEM is ~20x oversized for this)
SLAB_ROWS, SLAB_COLS = 64, 128  # packed weight slab (one DMA for all weights)
W2_ROW = 32                     # sublane-aligned band for the layer-2/3 weights


def _initial_condition(x):
    # callable initial condition: u(x, t=0) = sin(pi * x)
    return jnp.sin(jnp.pi * x)


def _sigmoid(z):
    # logistic via a single EUP transcendental: sigmoid(z) = 0.5*(tanh(z/2)+1)
    return 0.5 * (jnp.tanh(0.5 * z) + 1.0)


# ---------------------------------------------------------------------------
# Pallas kernel: 'fafaf' MLP + anzatc, fused, batch-in-lanes, strip-mined
# ---------------------------------------------------------------------------
def _convblock_kernel(xs_ref, slab_ref, sc_ref, out_ref, *,
                      lower, upper, t0, bc, chunk):
    # Resident weights, loaded once per grid step from the packed slab.
    w1x = slab_ref[0:F1, 0:1]                           # (F1, 1)
    w1t = slab_ref[0:F1, 1:2]                           # (F1, 1)
    b1 = slab_ref[0:F1, NDIMS:NDIMS + 1]                # (F1, 1)
    w2 = slab_ref[W2_ROW:W2_ROW + F2, 0:F1]             # (F2, F1)
    b2 = slab_ref[W2_ROW:W2_ROW + F2, F1:F1 + 1]        # (F2, 1)
    w3 = slab_ref[W2_ROW:W2_ROW + F2, F1 + 1:F1 + 2]    # (F2, 1)
    b3 = sc_ref[0]                                      # SMEM scalar
    inv_scale = sc_ref[1]                               # exp(-log_scale), hoisted

    tile_n = out_ref.shape[1]
    n_chunks = tile_n // chunk
    inv_span2 = 1.0 / ((upper - lower) * (upper - lower))

    def body(c, carry):
        start = pl.multiple_of(c * chunk, chunk)
        cols = pl.ds(start, chunk)
        x_sp = xs_ref[0:1, cols]                        # (1, C)
        t = xs_ref[1:2, cols]                           # (1, C)

        # ---- layer 1 ('fa', K=2): two broadcast FMAs on the VPU, no MXU ----
        h = _sigmoid(w1x * x_sp + w1t * t + b1)         # (F1, C)

        # ---- layer 2 ('fa', 20 -> 30): the only matmul worth the MXU ----
        h = _sigmoid(
            jnp.dot(w2, h, preferred_element_type=jnp.float32,
                    precision=lax.Precision.HIGHEST) + b2)   # (F2, C)

        # ---- layer 3 ('f', 30 -> 1): elementwise mul + sublane reduce (XLU) ----
        u = jnp.sum(w3 * h, axis=0, keepdims=True) + b3      # (1, C)

        # ---- anzatc: boundary factor (single spatial dim -> one product) ----
        u = u * ((x_sp - lower) * (upper - x_sp) * inv_span2) + bc

        # ---- anzatc: initial-condition blend with trainable scale ----
        sig = _sigmoid((t - t0) * inv_scale)
        out_ref[0:1, cols] = (sig - 0.5) * u + _initial_condition(x_sp)
        return carry

    lax.fori_loop(0, n_chunks, body, 0, unroll=True)


def _plan(n):
    """Pick (n_padded, tile_n): lane-granule 256, tile cap 8192, >=2 grid steps
    whenever n allows it (v7x megacore)."""
    n_g = -(-n // LANE_GRANULE)                 # granules needed
    if n_g <= 1:
        return LANE_GRANULE, LANE_GRANULE
    steps = max(2, -(-(n_g * LANE_GRANULE) // TILE_CAP))
    tile_g = -(-n_g // steps)
    tile = tile_g * LANE_GRANULE
    return steps * tile, tile


def convblock_forward(xs, params):
    """xs: (N, NDIMS) float32 collocation points. Returns (N, 1) float32."""
    w1, b1, w2, b2, w3, b3, log_scale = params
    n = xs.shape[0]
    n_padded, tile_n = _plan(n)
    chunk = 512 if tile_n % 512 == 0 else 256

    # Layout plumbing (outside the kernel): batch-in-lanes, zero-padded lanes.
    xs_t = jnp.zeros((NDIMS, n_padded), jnp.float32).at[:, :n].set(xs.T)

    # Pack all small weight tensors into a single (64, 128) f32 slab -> one DMA.
    slab = jnp.zeros((SLAB_ROWS, SLAB_COLS), jnp.float32)
    slab = slab.at[0:F1, 0:NDIMS].set(w1.T)                       # w1_x | w1_t
    slab = slab.at[0:F1, NDIMS].set(b1)
    slab = slab.at[W2_ROW:W2_ROW + F2, 0:F1].set(w2.T)
    slab = slab.at[W2_ROW:W2_ROW + F2, F1].set(b2)
    slab = slab.at[W2_ROW:W2_ROW + F2, F1 + 1].set(w3.reshape(F2))

    # SMEM scalars: [b3, exp(-log_scale)] (EUP exp hoisted to the wrapper).
    scalars = jnp.stack([jnp.reshape(b3, ()),
                         jnp.exp(-jnp.reshape(log_scale, ()))])

    kernel = functools.partial(_convblock_kernel, lower=LOWER, upper=UPPER,
                               t0=T0, bc=BC, chunk=chunk)
    const = lambda i: (0, 0)

    out = pl.pallas_call(
        kernel,
        out_shape=jax.ShapeDtypeStruct((1, n_padded), jnp.float32),
        grid_spec=pltpu.PrefetchScalarGridSpec(
            num_scalar_prefetch=0,
            grid=(n_padded // tile_n,),
            in_specs=[
                pl.BlockSpec((NDIMS, tile_n), lambda i: (0, i)),       # xs_t
                pl.BlockSpec((SLAB_ROWS, SLAB_COLS), const),           # weights
                pl.BlockSpec(memory_space=pltpu.MemorySpace.SMEM),     # scalars
            ],
            out_specs=pl.BlockSpec((1, tile_n), lambda i: (0, i)),     # lane-dense
        ),
        compiler_params=pltpu.CompilerParams(
            dimension_semantics=("parallel",)),
    )(xs_t, slab, scalars)

    return out[0, :n].reshape(n, 1)


# ---------------------------------------------------------------------------
# Pure-JAX reference (points-first layout, like the PyTorch module)
# ---------------------------------------------------------------------------
def convblock_forward_ref(xs, params):
    w1, b1, w2, b2, w3, b3, log_scale = params
    hi = lax.Precision.HIGHEST
    h = jax.nn.sigmoid(jnp.dot(xs, w1, precision=hi) + b1)
    h = jax.nn.sigmoid(jnp.dot(h, w2, precision=hi) + b2)
    u = jnp.dot(h, w3, precision=hi) + b3

    x_sp = xs[:, :NDIMS_SPATIAL]
    t = xs[:, NDIMS - 1:NDIMS]
    span = UPPER - LOWER
    w_bnd = ((x_sp - LOWER) / span) * ((UPPER - x_sp) / span)
    u = u * w_bnd + BC
    sig = jax.nn.sigmoid((t - T0) / jnp.exp(log_scale))
    return (sig - 0.5) * u + _initial_condition(x_sp)


def init_params(key):
    k1, k2, k3 = jax.random.split(key, 3)
    w1 = jax.random.normal(k1, (TOTAL, F1), jnp.float32) * 0.5
    b1 = jnp.zeros((F1,), jnp.float32)
    w2 = jax.random.normal(k2, (F1, F2), jnp.float32) * (1.0 / jnp.sqrt(F1))
    b2 = jnp.zeros((F2,), jnp.float32)
    w3 = jax.random.normal(k3, (F2, F_OUT), jnp.float32) * (1.0 / jnp.sqrt(F2))
    b3 = jnp.zeros((), jnp.float32)
    log_scale = jnp.zeros((), jnp.float32)      # nn.Parameter(torch.tensor(0.0))
    return (w1, b1, w2, b2, w3, b3, log_scale)


if __name__ == "__main__":
    key = jax.random.PRNGKey(0)
    kx, kp = jax.random.split(key)
    xs = jax.random.uniform(kx, (N_POINTS, NDIMS), jnp.float32)  # points in [0,1)^2
    params = init_params(kp)

    out = jax.block_until_ready(convblock_forward(xs, params))
    ref = convblock_forward_ref(xs, params)
    assert out.shape == (N_POINTS, 1)
    assert jnp.allclose(out, ref, atol=1e-4, rtol=1e-4), "mismatch vs reference"

    # TODO(synk): freeze/unfreeze_trainable, the generic batchflow Block/layout
    # parser and autograd-based PDE residuals are training-time machinery with
    # no forward-pass Pallas equivalent; the 'fafaf' default is baked in.
    print("KERNEL_OK")
</pallas_src>

<mosaic_0001>
module attributes {stable_mosaic.version = 11 : i64} {
  func.func @_convblock_kernel(%arg0: i32, %arg1: memref<2x512xf32, #tpu.memory_space<vmem>>, %arg2: memref<64x128xf32, #tpu.memory_space<vmem>>, %arg3: memref<2xf32, #tpu.memory_space<smem>>, %arg4: memref<1x512xf32, #tpu.memory_space<vmem>>) attributes {dimension_semantics = [#tpu.dimension_semantics<parallel>], iteration_bounds = array<i64: 2>, scalar_prefetch = 0 : i64, scratch_operands = 0 : i64, tpu.core_type = #tpu.core_type<tc>, window_params = [{transform_indices = @transform_0, window_bounds = array<i64: 2, 512>}, {pipeline_mode = #tpu.pipeline_mode<synchronous>, transform_indices = @transform_1, window_bounds = array<i64: 64, 128>}, {transform_indices = @transform_2, window_bounds = array<i64: 2>}, {transform_indices = @transform_3, window_bounds = array<i64: 1, 512>}]} {
    %c0 = arith.constant 0 : index
    %c0_0 = arith.constant 0 : index
    %0 = vector.load %arg2[%c0, %c0_0] : memref<64x128xf32, #tpu.memory_space<vmem>>, vector<20x1xf32>
    %c0_1 = arith.constant 0 : index
    %c1 = arith.constant 1 : index
    %1 = vector.load %arg2[%c0_1, %c1] : memref<64x128xf32, #tpu.memory_space<vmem>>, vector<20x1xf32>
    %c0_2 = arith.constant 0 : index
    %c2 = arith.constant 2 : index
    %2 = vector.load %arg2[%c0_2, %c2] : memref<64x128xf32, #tpu.memory_space<vmem>>, vector<20x1xf32>
    %c32 = arith.constant 32 : index
    %c0_3 = arith.constant 0 : index
    %3 = vector.load %arg2[%c32, %c0_3] : memref<64x128xf32, #tpu.memory_space<vmem>>, vector<30x20xf32>
    %c32_4 = arith.constant 32 : index
    %c20 = arith.constant 20 : index
    %4 = vector.load %arg2[%c32_4, %c20] : memref<64x128xf32, #tpu.memory_space<vmem>>, vector<30x1xf32>
    %c32_5 = arith.constant 32 : index
    %c21 = arith.constant 21 : index
    %5 = vector.load %arg2[%c32_5, %c21] : memref<64x128xf32, #tpu.memory_space<vmem>>, vector<30x1xf32>
    %c0_6 = arith.constant 0 : index
    %6 = memref.load %arg3[%c0_6] : memref<2xf32, #tpu.memory_space<smem>>
    %c1_7 = arith.constant 1 : index
    %7 = memref.load %arg3[%c1_7] : memref<2xf32, #tpu.memory_space<smem>>
    %c0_i32 = arith.constant 0 : i32
    %c512_i32 = arith.constant 512 : i32
    %8 = arith.muli %c0_i32, %c512_i32 : i32
    %9 = tpu.assume_multiple %8, 512 : i32
    %c0_8 = arith.constant 0 : index
    %10 = arith.index_cast %9 : i32 to index
    %11 = vector.load %arg1[%c0_8, %10] : memref<2x512xf32, #tpu.memory_space<vmem>>, vector<1x512xf32>
    %c1_9 = arith.constant 1 : index
    %12 = arith.index_cast %9 : i32 to index
    %13 = vector.load %arg1[%c1_9, %12] : memref<2x512xf32, #tpu.memory_space<vmem>>, vector<1x512xf32>
    %14 = vector.broadcast %0 : vector<20x1xf32> to vector<20x512xf32>
    %15 = vector.broadcast %11 : vector<1x512xf32> to vector<20x512xf32>
    %16 = arith.mulf %14, %15 : vector<20x512xf32>
    %17 = vector.broadcast %1 : vector<20x1xf32> to vector<20x512xf32>
    %18 = vector.broadcast %13 : vector<1x512xf32> to vector<20x512xf32>
    %19 = arith.mulf %17, %18 : vector<20x512xf32>
    %20 = arith.addf %16, %19 : vector<20x512xf32>
    %21 = vector.broadcast %2 : vector<20x1xf32> to vector<20x512xf32>
    %22 = arith.addf %20, %21 : vector<20x512xf32>
    %cst = arith.constant 5.000000e-01 : f32
    %23 = vector.broadcast %cst : f32 to vector<20x512xf32>
    %24 = arith.mulf %23, %22 : vector<20x512xf32>
    %25 = math.tanh %24 : vector<20x512xf32>
    %cst_10 = arith.constant 1.000000e+00 : f32
    %26 = vector.broadcast %cst_10 : f32 to vector<20x512xf32>
    %27 = arith.addf %25, %26 : vector<20x512xf32>
    %cst_11 = arith.constant 5.000000e-01 : f32
    %28 = vector.broadcast %cst_11 : f32 to vector<20x512xf32>
    %29 = arith.mulf %28, %27 : vector<20x512xf32>
    %cst_12 = arith.constant dense<0.000000e+00> : vector<30x512xf32>
    %30 = tpu.matmul %3, %29, %cst_12 {dimension_numbers = #tpu.dot_dimension_numbers<[1], [0], [0], [1], [0, 0, 1, 1], [], []>, precision = #tpu.contract_precision<fp32>} : vector<30x20xf32>, vector<20x512xf32>, vector<30x512xf32> -> vector<30x512xf32>
    %31 = vector.broadcast %4 : vector<30x1xf32> to vector<30x512xf32>
    %32 = arith.addf %30, %31 : vector<30x512xf32>
    %cst_13 = arith.constant 5.000000e-01 : f32
    %33 = vector.broadcast %cst_13 : f32 to vector<30x512xf32>
    %34 = arith.mulf %33, %32 : vector<30x512xf32>
    %35 = math.tanh %34 : vector<30x512xf32>
    %cst_14 = arith.constant 1.000000e+00 : f32
    %36 = vector.broadcast %cst_14 : f32 to vector<30x512xf32>
    %37 = arith.addf %35, %36 : vector<30x512xf32>
    %cst_15 = arith.constant 5.000000e-01 : f32
    %38 = vector.broadcast %cst_15 : f32 to vector<30x512xf32>
    %39 = arith.mulf %38, %37 : vector<30x512xf32>
    %40 = vector.broadcast %5 : vector<30x1xf32> to vector<30x512xf32>
    %41 = arith.mulf %40, %39 : vector<30x512xf32>
    %cst_16 = arith.constant dense<0.000000e+00> : vector<512xf32>
    %42 = vector.multi_reduction <add>, %41, %cst_16 [0] : vector<30x512xf32> to vector<512xf32>
    %43 = vector.shape_cast %42 : vector<512xf32> to vector<1x512xf32>
    %44 = vector.broadcast %6 : f32 to vector<1x512xf32>
    %45 = arith.addf %43, %44 : vector<1x512xf32>
    %cst_17 = arith.constant 0.000000e+00 : f32
    %46 = vector.broadcast %cst_17 : f32 to vector<1x512xf32>
    %47 = arith.subf %11, %46 : vector<1x512xf32>
    %cst_18 = arith.constant 1.000000e+00 : f32
    %48 = vector.broadcast %cst_18 : f32 to vector<1x512xf32>
    %49 = arith.subf %48, %11 : vector<1x512xf32>
    %50 = arith.mulf %47, %49 : vector<1x512xf32>
    %cst_19 = arith.constant 1.000000e+00 : f32
    %51 = vector.broadcast %cst_19 : f32 to vector<1x512xf32>
    %52 = arith.mulf %50, %51 : vector<1x512xf32>
    %53 = arith.mulf %45, %52 : vector<1x512xf32>
    %cst_20 = arith.constant 0.000000e+00 : f32
    %54 = vector.broadcast %cst_20 : f32 to vector<1x512xf32>
    %55 = arith.addf %53, %54 : vector<1x512xf32>
    %cst_21 = arith.constant 0.000000e+00 : f32
    %56 = vector.broadcast %cst_21 : f32 to vector<1x512xf32>
    %57 = arith.subf %13, %56 : vector<1x512xf32>
    %58 = vector.broadcast %7 : f32 to vector<1x512xf32>
    %59 = arith.mulf %57, %58 : vector<1x512xf32>
    %cst_22 = arith.constant 5.000000e-01 : f32
    %60 = vector.broadcast %cst_22 : f32 to vector<1x512xf32>
    %61 = arith.mulf %60, %59 : vector<1x512xf32>
    %62 = math.tanh %61 : vector<1x512xf32>
    %cst_23 = arith.constant 1.000000e+00 : f32
    %63 = vector.broadcast %cst_23 : f32 to vector<1x512xf32>
    %64 = arith.addf %62, %63 : vector<1x512xf32>
    %cst_24 = arith.constant 5.000000e-01 : f32
    %65 = vector.broadcast %cst_24 : f32 to vector<1x512xf32>
    %66 = arith.mulf %65, %64 : vector<1x512xf32>
    %cst_25 = arith.constant 5.000000e-01 : f32
    %67 = vector.broadcast %cst_25 : f32 to vector<1x512xf32>
    %68 = arith.subf %66, %67 : vector<1x512xf32>
    %69 = arith.mulf %68, %55 : vector<1x512xf32>
    %cst_26 = arith.constant 3.14159274 : f32
    %70 = vector.broadcast %cst_26 : f32 to vector<1x512xf32>
    %71 = arith.mulf %70, %11 : vector<1x512xf32>
    %72 = math.sin %71 : vector<1x512xf32>
    %73 = arith.addf %69, %72 : vector<1x512xf32>
    %c0_27 = arith.constant 0 : index
    %74 = arith.index_cast %9 : i32 to index
    %75 = vector.load %arg4[%c0_27, %74] : memref<1x512xf32, #tpu.memory_space<vmem>>, vector<1x512xf32>
    tpu.vector_store %arg4[%c0_27, %74], %73 {strides = array<i32>} : memref<1x512xf32, #tpu.memory_space<vmem>>, vector<1x512xf32>,
    %c1_i32 = arith.constant 1 : i32
    return
  }
  func.func @transform_0(%arg0: i32) -> (i32, i32) {
    %c0_i32 = arith.constant 0 : i32
    %c0_i32_0 = arith.constant 0 : i32
    return %c0_i32, %arg0 : i32, i32
  }
  func.func @transform_1(%arg0: i32) -> (i32, i32) {
    %c0_i32 = arith.constant 0 : i32
    %c0_i32_0 = arith.constant 0 : i32
    %c0_i32_1 = arith.constant 0 : i32
    return %c0_i32, %c0_i32_0 : i32, i32
  }
  func.func @transform_2(%arg0: i32) -> i32 {
    %c0_i32 = arith.constant 0 : i32
    %c0_i32_0 = arith.constant 0 : i32
    return %c0_i32 : i32
  }
  func.func @transform_3(%arg0: i32) -> (i32, i32) {
    %c0_i32 = arith.constant 0 : i32
    %c0_i32_0 = arith.constant 0 : i32
    return %c0_i32, %arg0 : i32, i32
  }
}

</mosaic_0001>

<llo_original>
// kernel: tpu_custom_call.1
$region0: #{tpu_custom_call.1}
  #allocation0 [shape = 'u32[]', space=smem, size = 0x4, offset = 0x4, fixed_abs, tag = 'smem constant byte address 0x4 - core index']
  #allocation1 [shape = 'u32[144,128]{1,0:T(1,128)}', space=vmem, size = 0x12000, scoped, tag = 'internal scratch']
  %s0 = inlined_call_operand.hbm [shape: f32[2,1024], index: 0, kind: input, shape index: {}]
  %s1 = inlined_call_operand.hbm [shape: f32[64,128], index: 1, kind: input, shape index: {}]
  %s2 = inlined_call_operand.vmem [shape: f32[2], index: 2, kind: input, shape index: {}]
  %s3 = inlined_call_operand.hbm [shape: f32[1,1024], index: 3, kind: output, shape index: {}]
  %s4 = sld [smem:[#allocation0]]
  $region57: #{tpu_custom_call.1} parent=0
    _
  %s6 = ssub.s32 1, %s4
  %s7 = scalar_select 0, %s6, %s4
  $region1: #{tpu_custom_call.1} parent=0
    #allocation2 [shape = 'u8[8192]{0}', space=vmem, size = 0x2000, scoped, tag = 'input window, operand 0']
    #allocation3 [shape = 's32[2]{0}', space=sflag, size = 0x8, scoped, tag = 'scoped memory for tpu_custom_call.1']
    #allocation4 [shape = 's32[2]{0}', space=sflag, size = 0x8, scoped, tag = 'scoped memory for tpu_custom_call.1']
    #allocation5 [shape = 's32[2]{0}', space=sflag, size = 0x8, scoped, tag = 'scoped memory for tpu_custom_call.1']
    #allocation6 [shape = 'u8[32768]{0}', space=vmem, size = 0x8000, scoped, tag = 'input window, operand 1, single buffered']
    #allocation7 [shape = 's32[1]{0}', space=sflag, size = 0x4, scoped, tag = 'scoped memory for tpu_custom_call.1']
    #allocation8 [shape = 'u8[512]{0}', space=smem, size = 0x200, scoped, tag = 'input window, operand 2, single buffered']
    #allocation9 [shape = 'u8[4096]{0}', space=vmem, size = 0x1000, scoped, tag = 'output window, operand 0']
    %8 = vsyncpa [#allocation3], 0
    %s9 = scalar_lea.sflag [#allocation3], 1
    %10 = vsyncpa %s9, 0
    %11 = vsyncpa [#allocation7], 0
    %12 = vsyncpa [#allocation5], 0
    %13 = vsyncpa [#allocation4], 0
    %s14 = scalar_lea.sflag [#allocation4], 1
    %15 = vsyncpa %s14, 0
    loop: start=0, step=1, limit=4
    $region2: #{tpu_custom_call.1} parent=1 // loop_pre_header
      _
    $region3: #{tpu_custom_call.1} parent=1 // loop_header
      %s17 = sphi 0, %s21
      %p18 = scmp.ge.s32.totalorder %s17, 4
      %s27 = sphi 0, %s29
      %s30 = sphi 0, %s27
      %s31 = sphi 0, %s30
      %s47 = sphi 0, %s31
      %s51 = sphi 0, %s51
      %s53 = sphi 0, %s51
      %s54 = sphi 0, %s53
      %s68 = sphi 0, %s54
      %s72 = sphi 0, %s72
      %s74 = sphi 0, %s72
      %s75 = sphi 0, %s74
      %s89 = sphi 0, %s75
      %s95 = sphi 0, %s97
      %s98 = sphi 0, %s95
      %s99 = sphi 0, %s98
      %s115 = sphi 0, %s99
    $region4: #{tpu_custom_call.1} parent=1 // loop_header_branch
      %20 = sbr.rel (%p18) target = $region8
    $region5: #{tpu_custom_call.1} parent=1 // loop_body
      %s22 = ssub.s32 %s17, 1
      %s23 = ssub.s32 %s17, 2
      %s24 = sadd.s32 %s17, 1
      %s25 = ssub.s32 %s17, %s24
      %p26 = scmp.eq.s32.totalorder %s25, 0
      %s28 = sadd.s32 %s27, 1
      %s29 = scalar_select %p26, %s27, %s28
      %p32 = pneg %p26
      %p33 = scmp.eq.s32.totalorder %s17, 1
      %p34 = por %p32, %p33
      %p35 = scmp.ne.s32.totalorder %s27, %s30
      %p36 = scmp.eq.s32.totalorder %s17, 0
      %p37 = por %p35, %p36
      %p38 = scmp.ne.s32.totalorder %s27, %s30
      %p39 = scmp.eq.s32.totalorder %s22, 1
      %p40 = por %p38, %p39
      %p41 = scmp.ne.s32.totalorder %s30, %s31
      %p42 = scmp.eq.s32.totalorder %s22, 0
      %p43 = por %p41, %p42
      %p44 = scmp.ne.s32.totalorder %s30, %s31
      %p45 = scmp.eq.s32.totalorder %s23, 1
      %p46 = por %p44, %p45
      %p48 = scmp.ne.s32.totalorder %s31, %s47
      %p49 = scmp.eq.s32.totalorder %s23, 0
      %p50 = por %p48, %p49
      %s52 = sadd.s32 %s51, 1
      %p55 = scmp.eq.s32.totalorder %s17, 1
      %p56 = scmp.ne.s32.totalorder %s51, %s53
      %p57 = scmp.eq.s32.totalorder %s17, 0
      %p58 = por %p56, %p57
      %p59 = scmp.ne.s32.totalorder %s51, %s53
      %p60 = scmp.eq.s32.totalorder %s22, 1
      %p61 = por %p59, %p60
      %p62 = scmp.ne.s32.totalorder %s53, %s54
      %p63 = scmp.eq.s32.totalorder %s22, 0
      %p64 = por %p62, %p63
      %p65 = scmp.ne.s32.totalorder %s53, %s54
      %p66 = scmp.eq.s32.totalorder %s23, 1
      %p67 = por %p65, %p66
      %p69 = scmp.ne.s32.totalorder %s54, %s68
      %p70 = scmp.eq.s32.totalorder %s23, 0
      %p71 = por %p69, %p70
      %s73 = sadd.s32 %s72, 1
      %p76 = scmp.eq.s32.totalorder %s17, 1
      %p77 = scmp.ne.s32.totalorder %s72, %s74
      %p78 = scmp.eq.s32.totalorder %s17, 0
      %p79 = por %p77, %p78
      %p80 = scmp.ne.s32.totalorder %s72, %s74
      %p81 = scmp.eq.s32.totalorder %s22, 1
      %p82 = por %p80, %p81
      %p83 = scmp.ne.s32.totalorder %s74, %s75
      %p84 = scmp.eq.s32.totalorder %s22, 0
      %p85 = por %p83, %p84
      %p86 = scmp.ne.s32.totalorder %s74, %s75
      %p87 = scmp.eq.s32.totalorder %s23, 1
      %p88 = por %p86, %p87
      %p90 = scmp.ne.s32.totalorder %s75, %s89
      %p91 = scmp.eq.s32.totalorder %s23, 0
      %p92 = por %p90, %p91
      %s93 = ssub.s32 %s17, %s24
      %p94 = scmp.eq.s32.totalorder %s93, 0
      %s96 = sadd.s32 %s95, 1
      %s97 = scalar_select %p94, %s95, %s96
      %p100 = pneg %p94
      %p101 = scmp.eq.s32.totalorder %s17, 1
      %p102 = por %p100, %p101
      %p103 = scmp.ne.s32.totalorder %s95, %s98
      %p104 = scmp.eq.s32.totalorder %s17, 0
      %p105 = por %p103, %p104
      %p106 = scmp.ne.s32.totalorder %s95, %s98
      %p107 = scmp.eq.s32.totalorder %s22, 1
      %p108 = por %p106, %p107
      %p109 = scmp.ne.s32.totalorder %s98, %s99
      %p110 = scmp.eq.s32.totalorder %s22, 0
      %p111 = por %p109, %p110
      %p112 = scmp.ne.s32.totalorder %s98, %s99
      %p113 = scmp.eq.s32.totalorder %s23, 1
      %p114 = por %p112, %p113
      %p116 = scmp.ne.s32.totalorder %s99, %s115
      %p117 = scmp.eq.s32.totalorder %s23, 0
      %p118 = por %p116, %p117
      %p119 = scmp.le.s32.totalorder 1, %s17
      %p120 = scmp.lt.s32.totalorder %s17, 3
      %p121 = pnand %p119, %p120
      %p122 = pneg %p121
      // Predicated region
      $region9: #{tpu_custom_call.1} parent=5 // pred_check
        _
      $region10: #{tpu_custom_call.1} parent=5 // pred_check_branch
        %124 = sbr.rel (%p121) target = $region12
      $region11: #{tpu_custom_call.1} parent=5 // pred_region
        %s125 = ssub.s32 %s17, 1
        // Predicated region
        $region13: #{tpu_custom_call.1} parent=11 // pred_check
          %p126 = pneg %p64
        $region14: #{tpu_custom_call.1} parent=11 // pred_check_branch
          %128 = sbr.rel (%p126) target = $region16
        $region15: #{tpu_custom_call.1} parent=11 // pred_region
          %s130 = ssub.s32 1024, 1024
          %131 = vsyncadd [#allocation7], %s130
          %s132 = sshll.u32 [#allocation6], 4
          %s133 = int_to_ptr.vmem [resolvable:$true] %s132
          %138 = dma.hbm_to_vmem [thread:$0]  %s1, 1024, %s133, [#allocation7], 128, 128, 8
        $region16: #{tpu_custom_call.1} parent=11 // pred_fallthru
          _
        // Predicated region
        $region17: #{tpu_custom_call.1} parent=11 // pred_check
          %p139 = pneg %p85
        $region18: #{tpu_custom_call.1} parent=11 // pred_check_branch
          %141 = sbr.rel (%p139) target = $region20
        $region19: #{tpu_custom_call.1} parent=11 // pred_region
          %s143 = ssub.s32 16, 16
          %144 = vsyncadd [#allocation5], %s143
          %s146 = sshll.u32 %s2, 4
          %s147 = int_to_ptr.vmem [resolvable:$true] %s146
          %149 = dma.vmem_to_smem %s147, 16, [#allocation8], [#allocation5]
        $region20: #{tpu_custom_call.1} parent=11 // pred_fallthru
          _
      $region12: #{tpu_custom_call.1} parent=5 // pred_fallthru
        _
      %p150 = scmp.lt.s32.totalorder %s17, 2
      // Predicated region
      $region21: #{tpu_custom_call.1} parent=5 // pred_check
        %p151 = pneg %p150
      $region22: #{tpu_custom_call.1} parent=5 // pred_check_branch
        %153 = sbr.rel (%p151) target = $region24
      $region23: #{tpu_custom_call.1} parent=5 // pred_region
        // Predicated region
        $region25: #{tpu_custom_call.1} parent=23 // pred_check
          %p154 = pneg %p37
        $region26: #{tpu_custom_call.1} parent=23 // pred_check_branch
          %156 = sbr.rel (%p154) target = $region28
        $region27: #{tpu_custom_call.1} parent=23 // pred_region
          %s157 = sand.u32 %s27, 1
          %s158 = scalar_lea.sflag [#allocation3], %s157
          %s159 = sand.u32 %s27, 1
          %s160 = smul.addr %s159, 8
          %s161 = scalar_lea.vmem [#allocation2], %s160
          %s162 = smul.u32 4, %s17
          %s164 = ssub.s32 128, 128
          %165 = vsyncadd %s158, %s164
          %s166 = smul.addr %s162, 32
          %s167 = scalar_lea.hbm %s0, %s166
          %s169 = sshll.u32 %s161, 4
          %s170 = int_to_ptr.vmem [resolvable:$true] %s169
          %172 = dma.hbm_to_vmem [thread:$0]  %s167, 128, %s170, %s158
        $region28: #{tpu_custom_call.1} parent=23 // pred_fallthru
          _
      $region24: #{tpu_custom_call.1} parent=5 // pred_fallthru
        _
      %p173 = scmp.le.s32.totalorder 1, %s17
      %p174 = scmp.lt.s32.totalorder %s17, 3
      %p175 = pnand %p173, %p174
      %p176 = pneg %p175
      // Predicated region
      $region29: #{tpu_custom_call.1} parent=5 // pred_check
        _
      $region30: #{tpu_custom_call.1} parent=5 // pred_check_branch
        %178 = sbr.rel (%p175) target = $region32
      $region31: #{tpu_custom_call.1} parent=5 // pred_region
        %s179 = ssub.s32 %s17, 1
        %s180 = sand.u32 %s30, 1
        %s181 = scalar_lea.sflag [#allocation3], %s180
        %s182 = sand.u32 %s30, 1
        %s183 = smul.addr %s182, 8
        %s184 = scalar_lea.vmem [#allocation2], %s183
        // Predicated region
        $region33: #{tpu_custom_call.1} parent=31 // pred_check
          %p185 = pneg %p43
        $region34: #{tpu_custom_call.1} parent=31 // pred_check_branch
          %187 = sbr.rel (%p185) target = $region36
        $region35: #{tpu_custom_call.1} parent=31 // pred_region
          %188 = dma.done %s181, 128
        $region36: #{tpu_custom_call.1} parent=31 // pred_fallthru
          _
        // Predicated region
        $region37: #{tpu_custom_call.1} parent=31 // pred_check
          %p189 = pneg %p64
        $region38: #{tpu_custom_call.1} parent=31 // pred_check_branch
          %191 = sbr.rel (%p189) target = $region40
        $region39: #{tpu_custom_call.1} parent=31 // pred_region
          %192 = dma.done [#allocation7], 1024
        $region40: #{tpu_custom_call.1} parent=31 // pred_fallthru
          _
        // Predicated region
        $region41: #{tpu_custom_call.1} parent=31 // pred_check
          %p193 = pneg %p85
        $region42: #{tpu_custom_call.1} parent=31 // pred_check_branch
          %195 = sbr.rel (%p193) target = $region44
        $region43: #{tpu_custom_call.1} parent=31 // pred_region
          %196 = dma.done [#allocation5], 16
        $region44: #{tpu_custom_call.1} parent=31 // pred_fallthru
          _
        %197 = sfence
        %s198 = sand.u32 %s30, 1
        %s199 = scalar_lea.sflag [#allocation3], %s198
        %s200 = sand.u32 %s30, 1
        %s201 = smul.addr %s200, 8
        %s202 = scalar_lea.vmem [#allocation2], %s201
        %p203 = pneg %p43
        %p204 = pneg %p40
        %p205 = pneg %p64
        %p206 = pneg %p61
        %p207 = pneg %p85
        %p208 = pneg %p82
        %p209 = pneg %p111
        %p210 = pneg %p108
        %s211 = sand.u32 %s98, 1
        %s212 = scalar_lea.sflag [#allocation4], %s211
        %s213 = sand.u32 %s98, 1
        %s214 = smul.addr %s213, 4
        %s215 = scalar_lea.vmem [#allocation9], %s214
        %s216 = smul.u32 4, %s22
        %s217 = smul.u32 4, %s22
        %v218 = vld [vmem:[#allocation6] sm:$0xff]
        %v219 = vld [vmem:[#allocation6 + $0x8] sm:$0xff]
        %v220 = vld [vmem:[#allocation6 + $0x10] sm:$0xf]
        %v221 = vld [vmem:[#allocation6 + $0x20] sm:$0xff]
        %v222 = vld [vmem:[#allocation6 + $0x28] sm:$0xff]
        %v223 = vld [vmem:[#allocation6 + $0x30] sm:$0xff]
        %v224 = vld [vmem:[#allocation6 + $0x38] sm:$0x3f]
        %s225 = sld [smem:[#allocation8]]
        %s226 = sld [smem:[#allocation8 + $0x1]]
        %v227 = vld [vmem:[%s184] ss:$2 sm:$0xf]
        %s228 = scalar_lea.vmem %s184, 1 [#allocation2]
        %v229 = vld [vmem:[%s228] ss:$2 sm:$0xf]
        %231 = vset.pattern.permute.xlu0 0
        %232 = vperm.xlu0 %231, %v218
        %v233 = vpop.permute.xlu0 %232
        %236 = vset.pattern.permute.xlu0 0
        %237 = vperm.xlu0 %236, %v219
        %v238 = vpop.permute.xlu0 %237
        %241 = vset.pattern.permute.xlu0 0
        %242 = vperm.xlu0 %241, %v220
        %v243 = vpop.permute.xlu0 %242
        %v246 = vlaneseq
        %v247 = vshrl.u32 %v246, 7
        %v248 = vsub.s32 0, %v247
        %v249 = vrot.slane %v227, %v248
        %v250 = vlaneseq
        %v251 = vshrl.u32 %v250, 7
        %v252 = vsub.s32 1, %v251
        %v253 = vrot.slane %v227, %v252
        %v254 = vlaneseq
        %v255 = vshrl.u32 %v254, 7
        %v256 = vsub.s32 2, %v255
        %v257 = vrot.slane %v227, %v256
        %v258 = vlaneseq
        %v259 = vshrl.u32 %v258, 7
        %v260 = vsub.s32 3, %v259
        %v261 = vrot.slane %v227, %v260
        %v266 = vmul.f32 %v233, %v249
        %v267 = vmul.f32 %v233, %v253
        %v268 = vmul.f32 %v233, %v257
        %v269 = vmul.f32 %v233, %v261
        %v270 = vmul.f32 %v238, %v249
        %v271 = vmul.f32 %v238, %v253
        %v272 = vmul.f32 %v238, %v257
        %v273 = vmul.f32 %v238, %v261
        %v274 = vmul.f32 %v243, %v249
        %v275 = vmul.f32 %v243, %v253
        %v276 = vmul.f32 %v243, %v257
        %v277 = vmul.f32 %v243, %v261
        %278 = vset.pattern.permute.xlu0 1
        %279 = vperm.xlu0 %278, %v218
        %v280 = vpop.permute.xlu0 %279
        %282 = vset.pattern.permute.xlu0 1
        %283 = vperm.xlu0 %282, %v219
        %v284 = vpop.permute.xlu0 %283
        %286 = vset.pattern.permute.xlu0 1
        %287 = vperm.xlu0 %286, %v220
        %v288 = vpop.permute.xlu0 %287
        %v291 = vlaneseq
        %v292 = vshrl.u32 %v291, 7
        %v293 = vsub.s32 0, %v292
        %v294 = vrot.slane %v229, %v293
        %v295 = vlaneseq
        %v296 = vshrl.u32 %v295, 7
        %v297 = vsub.s32 1, %v296
        %v298 = vrot.slane %v229, %v297
        %v299 = vlaneseq
        %v300 = vshrl.u32 %v299, 7
        %v301 = vsub.s32 2, %v300
        %v302 = vrot.slane %v229, %v301
        %v303 = vlaneseq
        %v304 = vshrl.u32 %v303, 7
        %v305 = vsub.s32 3, %v304
        %v306 = vrot.slane %v229, %v305
        %v311 = vmul.f32 %v280, %v294
        %v312 = vmul.f32 %v280, %v298
        %v313 = vmul.f32 %v280, %v302
        %v314 = vmul.f32 %v280, %v306
        %v315 = vmul.f32 %v284, %v294
        %v316 = vmul.f32 %v284, %v298
        %v317 = vmul.f32 %v284, %v302
        %v318 = vmul.f32 %v284, %v306
        %v319 = vmul.f32 %v288, %v294
        %v320 = vmul.f32 %v288, %v298
        %v321 = vmul.f32 %v288, %v302
        %v322 = vmul.f32 %v288, %v306
        %v323 = vadd.f32 %v266, %v311
        %v324 = vadd.f32 %v267, %v312
        %v325 = vadd.f32 %v268, %v313
        %v326 = vadd.f32 %v269, %v314
        %v327 = vadd.f32 %v270, %v315
        %v328 = vadd.f32 %v271, %v316
        %v329 = vadd.f32 %v272, %v317
        %v330 = vadd.f32 %v273, %v318
        %v331 = vadd.f32 %v274, %v319
        %v332 = vadd.f32 %v275, %v320
        %v333 = vadd.f32 %v276, %v321
        %v334 = vadd.f32 %v277, %v322
        %335 = vset.pattern.permute.xlu0 2
        %336 = vperm.xlu0 %335, %v218
        %v337 = vpop.permute.xlu0 %336
        %339 = vset.pattern.permute.xlu0 2
        %340 = vperm.xlu0 %339, %v219
        %v341 = vpop.permute.xlu0 %340
        %343 = vset.pattern.permute.xlu0 2
        %344 = vperm.xlu0 %343, %v220
        %v345 = vpop.permute.xlu0 %344
        %v347 = vadd.f32 %v323, %v337
        %v348 = vadd.f32 %v324, %v337
        %v349 = vadd.f32 %v325, %v337
        %v350 = vadd.f32 %v326, %v337
        %v351 = vadd.f32 %v327, %v341
        %v352 = vadd.f32 %v328, %v341
        %v353 = vadd.f32 %v329, %v341
        %v354 = vadd.f32 %v330, %v341
        %v355 = vadd.f32 %v331, %v345
        %v356 = vadd.f32 %v332, %v345
        %v357 = vadd.f32 %v333, %v345
        %v358 = vadd.f32 %v334, %v345
        %v359 = vmul.f32 %v347, 0.5
        %v360 = vmul.f32 %v348, 0.5
        %v361 = vmul.f32 %v349, 0.5
        %v362 = vmul.f32 %v350, 0.5
        %v363 = vmul.f32 %v351, 0.5
        %v364 = vmul.f32 %v352, 0.5
        %v365 = vmul.f32 %v353, 0.5
        %v366 = vmul.f32 %v354, 0.5
        %v367 = vmul.f32 %v355, 0.5
        %v368 = vmul.f32 %v356, 0.5
        %v369 = vmul.f32 %v357, 0.5
        %v370 = vmul.f32 %v358, 0.5
        %v371 = vtanh.pop %v359
        %v372 = vtanh.pop %v360
        %v373 = vtanh.pop %v361
        %v374 = vtanh.pop %v362
        %v375 = vtanh.pop %v363
        %v376 = vtanh.pop %v364
        %v377 = vtanh.pop %v365
        %v378 = vtanh.pop %v366
        %v379 = vtanh.pop %v367
        %v380 = vtanh.pop %v368
        %v381 = vtanh.pop %v369
        %v382 = vtanh.pop %v370
        %v383 = vadd.f32 %v371, 1.0
        %v384 = vadd.f32 %v372, 1.0
        %v385 = vadd.f32 %v373, 1.0
        %v386 = vadd.f32 %v374, 1.0
        %v387 = vadd.f32 %v375, 1.0
        %v388 = vadd.f32 %v376, 1.0
        %v389 = vadd.f32 %v377, 1.0
        %v390 = vadd.f32 %v378, 1.0
        %v391 = vadd.f32 %v379, 1.0
        %v392 = vadd.f32 %v380, 1.0
        %v393 = vadd.f32 %v381, 1.0
        %v394 = vadd.f32 %v382, 1.0
        %v395 = vmul.f32 %v383, 0.5
        %v396 = vmul.f32 %v384, 0.5
        %v397 = vmul.f32 %v385, 0.5
        %v398 = vmul.f32 %v386, 0.5
        %v399 = vmul.f32 %v387, 0.5
        %v400 = vmul.f32 %v388, 0.5
        %v401 = vmul.f32 %v389, 0.5
        %v402 = vmul.f32 %v390, 0.5
        %v403 = vmul.f32 %v391, 0.5
        %v404 = vmul.f32 %v392, 0.5
        %v405 = vmul.f32 %v393, 0.5
        %v406 = vmul.f32 %v394, 0.5
        %408 = vset.pattern.permute.xlu0 20
        %409 = vperm.xlu0 %408, %v221
        %v410 = vpop.permute.xlu0 %409
        %413 = vset.pattern.permute.xlu0 20
        %414 = vperm.xlu0 %413, %v222
        %v415 = vpop.permute.xlu0 %414
        %418 = vset.pattern.permute.xlu0 20
        %419 = vperm.xlu0 %418, %v223
        %v420 = vpop.permute.xlu0 %419
        %423 = vset.pattern.permute.xlu0 20
        %424 = vperm.xlu0 %423, %v224
        %v425 = vpop.permute.xlu0 %424
        %vm427 = vcmask 162816
        %v428 = vsel %vm427, %v221, 0
        %v430 = vsel %vm427, %v222, 0
        %v432 = vsel %vm427, %v223, 0
        %v434 = vsel %vm427, %v224, 0
        %vm436 = vcmask 1043456
        %v438 = vsel %vm436, %v403, 0
        %v441 = vsel %vm436, %v404, 0
        %v444 = vsel %vm436, %v405, 0
        %v447 = vsel %vm436, %v406, 0
        %v449 = vand.u32 %v396, 4294901760
        %450 = vmatprep.subr.mxu0 %v449
        %v451 = vand.u32 %v395, 4294901760
        %452 = vmatpush1.msra.mxu0 %v451
        %v453 = vand.u32 %v400, 4294901760
        %454 = vmatprep.subr.mxu0 %v453
        %v455 = vand.u32 %v399, 4294901760
        %456 = vmatpush1.msra.mxu0 %v455
        %v457 = vand.u32 %v441, 4294901760
        %458 = vmatprep.subr.mxu0 %v457
        %v459 = vand.u32 %v438, 4294901760
        %460 = vmatpush1.msra.mxu0 %v459
        %461 = vmatprep.subr.mxu0 0.0
        %462 = vmatpush1.msra.mxu0 0.0
        %463 = vmatprep.subr.mxu0 0.0
        %464 = vmatpush1.msra.mxu0 0.0
        %465 = vmatprep.subr.mxu0 0.0
        %466 = vmatpush1.msra.mxu0 0.0
        %467 = vmatprep.subr.mxu0 0.0
        %468 = vmatpush1.msra.mxu0 0.0
        %469 = vmatprep.subr.mxu0 0.0
        %470 = vmatpush1.msra.mxu0 0.0
        %471 = vmatprep.subr.mxu0 0.0
        %472 = vmatpush1.msra.mxu0 0.0
        %473 = vmatprep.subr.mxu0 0.0
        %474 = vmatpush1.msra.mxu0 0.0
        %475 = vmatprep.subr.mxu0 0.0
        %476 = vmatpush1.msra.mxu0 0.0
        %477 = vmatprep.subr.mxu0 0.0
        %478 = vmatpush1.msra.mxu0 0.0
        %479 = vmatprep.subr.mxu0 0.0
        %480 = vmatpush1.msra.mxu0 0.0
        %481 = vmatprep.subr.mxu0 0.0
        %482 = vmatpush1.msra.mxu0 0.0
        %483 = vmatprep.subr.mxu0 0.0
        %484 = vmatpush1.msra.mxu0 0.0
        %485 = vmatprep.subr.mxu0 0.0
        %486 = vmatpush1.msra.mxu0 0.0
        %487 = vmatprep.subr.mxu0 0.0
        %488 = vmatpush1.msra.mxu0 0.0
        %489 = vmatprep.subr.mxu0 0.0
        %490 = vmatpush1.msra.mxu0 0.0
        %491 = vmatprep.subr.mxu0 0.0
        %492 = vmatpush1.msra.mxu0 0.0
        %493 = vmatprep.subr.mxu0 0.0
        %494 = vmatpush1.msra.mxu0 0.0
        %495 = vmatprep.subr.mxu0 0.0
        %496 = vmatpush1.msra.mxu0 0.0
        %497 = vmatprep.subr.mxu0 0.0
        %498 = vmatpush1.msra.mxu0 0.0
        %499 = vmatprep.subr.mxu0 0.0
        %500 = vmatpush1.msra.mxu0 0.0
        %501 = vmatprep.subr.mxu0 0.0
        %502 = vmatpush1.msra.mxu0 0.0
        %503 = vmatprep.subr.mxu0 0.0
        %504 = vmatpush1.msra.mxu0 0.0
        %505 = vmatprep.subr.mxu0 0.0
        %506 = vmatpush1.msra.mxu0 0.0
        %507 = vmatprep.subr.mxu0 0.0
        %508 = vmatpush1.msra.mxu0 0.0
        %509 = vmatprep.subr.mxu0 0.0
        %510 = vmatpush1.msra.mxu0 0.0
        %511 = vmatprep.subr.mxu0 0.0
        %512 = vmatpush1.msra.mxu0 0.0
        %513 = vmatprep.subr.mxu0 0.0
        %514 = vmatpush1.msra.mxu0 0.0
        %515 = vmatprep.subr.mxu0 0.0
        %516 = vmatpush1.msra.mxu0 0.0
        %517 = vmatprep.subr.mxu0 0.0
        %518 = vmatpush1.msra.mxu0 0.0
        %519 = vmatprep.mubr.f32.mxu0 0.0
        %v520 = vand.u32 %v428, 4294901760
        %v521 = vsub.f32 %v428, %v520
        %v522 = vand.u32 %v521, 4294901760
        %v523 = vsub.f32 %v521, %v522
        %v524 = vand.u32 %v523, 4294901760
        %525 = vmatmul.mubr.f32.gmra.mrb[0].mxu0 %v524
        %v526 = vpop.f32.mrb[0].mxu0
        %v527 = vadd.f32 %v410, %v526
        %v528 = vpop.f32.mrb[0].mxu0
        %v529 = vadd.f32 %v410, %v528
        %530 = vmatprep.mubr.f32.mxu0 0.0
        %v531 = vand.u32 %v430, 4294901760
        %v532 = vsub.f32 %v430, %v531
        %v533 = vand.u32 %v532, 4294901760
        %v534 = vsub.f32 %v532, %v533
        %v535 = vand.u32 %v534, 4294901760
        %536 = vmatmul.mubr.f32.gmra.mrb[0].mxu0 %v535
        %v537 = vpop.f32.mrb[0].mxu0
        %v538 = vadd.f32 %v415, %v537
        %v539 = vpop.f32.mrb[0].mxu0
        %v540 = vadd.f32 %v415, %v539
        %541 = vmatprep.mubr.f32.mxu0 0.0
        %v542 = vand.u32 %v432, 4294901760
        %v543 = vsub.f32 %v432, %v542
        %v544 = vand.u32 %v543, 4294901760
        %v545 = vsub.f32 %v543, %v544
        %v546 = vand.u32 %v545, 4294901760
        %547 = vmatmul.mubr.f32.gmra.mrb[0].mxu0 %v546
        %v548 = vpop.f32.mrb[0].mxu0
        %v549 = vadd.f32 %v420, %v548
        %v550 = vpop.f32.mrb[0].mxu0
        %v551 = vadd.f32 %v420, %v550
        %552 = vmatprep.mubr.f32.mxu0 0.0
        %v553 = vand.u32 %v434, 4294901760
        %v554 = vsub.f32 %v434, %v553
        %v555 = vand.u32 %v554, 4294901760
        %v556 = vsub.f32 %v554, %v555
        %v557 = vand.u32 %v556, 4294901760
        %558 = vmatmul.mubr.f32.gmra.mrb[0].mxu0 %v557
        %v559 = vpop.f32.mrb[0].mxu0
        %v560 = vadd.f32 %v425, %v559
        %v561 = vpop.f32.mrb[0].mxu0
        %v562 = vadd.f32 %v425, %v561
        %563 = vdwg.mxu0
        %v564 = vand.u32 %v396, 4294901760
        %v565 = vsub.f32 %v396, %v564
        %v566 = vand.u32 %v565, 4294901760
        %v567 = vsub.f32 %v565, %v566
        %v568 = vand.u32 %v567, 4294901760
        %569 = vmatprep.subr.mxu0 %v568
        %v570 = vand.u32 %v395, 4294901760
        %v571 = vsub.f32 %v395, %v570
        %v572 = vand.u32 %v571, 4294901760
        %v573 = vsub.f32 %v571, %v572
        %v574 = vand.u32 %v573, 4294901760
        %575 = vmatpush1.msra.mxu0 %v574
        %v576 = vand.u32 %v400, 4294901760
        %v577 = vsub.f32 %v400, %v576
        %v578 = vand.u32 %v577, 4294901760
        %v579 = vsub.f32 %v577, %v578
        %v580 = vand.u32 %v579, 4294901760
        %581 = vmatprep.subr.mxu0 %v580
        %v582 = vand.u32 %v399, 4294901760
        %v583 = vsub.f32 %v399, %v582
        %v584 = vand.u32 %v583, 4294901760
        %v585 = vsub.f32 %v583, %v584
        %v586 = vand.u32 %v585, 4294901760
        %587 = vmatpush1.msra.mxu0 %v586
        %v588 = vand.u32 %v441, 4294901760
        %v589 = vsub.f32 %v441, %v588
        %v590 = vand.u32 %v589, 4294901760
        %v591 = vsub.f32 %v589, %v590
        %v592 = vand.u32 %v591, 4294901760
        %593 = vmatprep.subr.mxu0 %v592
        %v594 = vand.u32 %v438, 4294901760
        %v595 = vsub.f32 %v438, %v594
        %v596 = vand.u32 %v595, 4294901760
        %v597 = vsub.f32 %v595, %v596
        %v598 = vand.u32 %v597, 4294901760
        %599 = vmatpush1.msra.mxu0 %v598
        %600 = vmatprep.subr.mxu0 0.0
        %601 = vmatpush1.msra.mxu0 0.0
        %602 = vmatprep.subr.mxu0 0.0
        %603 = vmatpush1.msra.mxu0 0.0
        %604 = vmatprep.subr.mxu0 0.0
        %605 = vmatpush1.msra.mxu0 0.0
        %606 = vmatprep.subr.mxu0 0.0
        %607 = vmatpush1.msra.mxu0 0.0
        %608 = vmatprep.subr.mxu0 0.0
        %609 = vmatpush1.msra.mxu0 0.0
        %610 = vmatprep.subr.mxu0 0.0
        %611 = vmatpush1.msra.mxu0 0.0
        %612 = vmatprep.subr.mxu0 0.0
        %613 = vmatpush1.msra.mxu0 0.0
        %614 = vmatprep.subr.mxu0 0.0
        %615 = vmatpush1.msra.mxu0 0.0
        %616 = vmatprep.subr.mxu0 0.0
        %617 = vmatpush1.msra.mxu0 0.0
        %618 = vmatprep.subr.mxu0 0.0
        %619 = vmatpush1.msra.mxu0 0.0
        %620 = vmatprep.subr.mxu0 0.0
        %621 = vmatpush1.msra.mxu0 0.0
        %622 = vmatprep.subr.mxu0 0.0
        %623 = vmatpush1.msra.mxu0 0.0
        %624 = vmatprep.subr.mxu0 0.0
        %625 = vmatpush1.msra.mxu0 0.0
        %626 = vmatprep.subr.mxu0 0.0
        %627 = vmatpush1.msra.mxu0 0.0
        %628 = vmatprep.subr.mxu0 0.0
        %629 = vmatpush1.msra.mxu0 0.0
        %630 = vmatprep.subr.mxu0 0.0
        %631 = vmatpush1.msra.mxu0 0.0
        %632 = vmatprep.subr.mxu0 0.0
        %633 = vmatpush1.msra.mxu0 0.0
        %634 = vmatprep.subr.mxu0 0.0
        %635 = vmatpush1.msra.mxu0 0.0
        %636 = vmatprep.subr.mxu0 0.0
        %637 = vmatpush1.msra.mxu0 0.0
        %638 = vmatprep.subr.mxu0 0.0
        %639 = vmatpush1.msra.mxu0 0.0
        %640 = vmatprep.subr.mxu0 0.0
        %641 = vmatpush1.msra.mxu0 0.0
        %642 = vmatprep.subr.mxu0 0.0
        %643 = vmatpush1.msra.mxu0 0.0
        %644 = vmatprep.subr.mxu0 0.0
        %645 = vmatpush1.msra.mxu0 0.0
        %646 = vmatprep.subr.mxu0 0.0
        %647 = vmatpush1.msra.mxu0 0.0
        %648 = vmatprep.subr.mxu0 0.0
        %649 = vmatpush1.msra.mxu0 0.0
        %650 = vmatprep.subr.mxu0 0.0
        %651 = vmatpush1.msra.mxu0 0.0
        %652 = vmatprep.subr.mxu0 0.0
        %653 = vmatpush1.msra.mxu0 0.0
        %654 = vmatprep.subr.mxu0 0.0
        %655 = vmatpush1.msra.mxu0 0.0
        %656 = vmatprep.subr.mxu0 0.0
        %657 = vmatpush1.msra.mxu0 0.0
        %658 = vmatprep.mubr.f32.mxu0 0.0
        %v659 = vand.u32 %v428, 4294901760
        %660 = vmatmul.mubr.f32.gmra.mrb[0].mxu0 %v659
        %v661 = vpop.f32.mrb[0].mxu0
        %v662 = vadd.f32 %v527, %v661
        %v663 = vpop.f32.mrb[0].mxu0
        %v664 = vadd.f32 %v529, %v663
        %665 = vmatprep.mubr.f32.mxu0 0.0
        %v666 = vand.u32 %v430, 4294901760
        %667 = vmatmul.mubr.f32.gmra.mrb[0].mxu0 %v666
        %v668 = vpop.f32.mrb[0].mxu0
        %v669 = vadd.f32 %v538, %v668
        %v670 = vpop.f32.mrb[0].mxu0
        %v671 = vadd.f32 %v540, %v670
        %672 = vmatprep.mubr.f32.mxu0 0.0
        %v673 = vand.u32 %v432, 4294901760
        %674 = vmatmul.mubr.f32.gmra.mrb[0].mxu0 %v673
        %v675 = vpop.f32.mrb[0].mxu0
        %v676 = vadd.f32 %v549, %v675
        %v677 = vpop.f32.mrb[0].mxu0
        %v678 = vadd.f32 %v551, %v677
        %679 = vmatprep.mubr.f32.mxu0 0.0
        %v680 = vand.u32 %v434, 4294901760
        %681 = vmatmul.mubr.f32.gmra.mrb[0].mxu0 %v680
        %v682 = vpop.f32.mrb[0].mxu0
        %v683 = vadd.f32 %v560, %v682
        %v684 = vpop.f32.mrb[0].mxu0
        %v685 = vadd.f32 %v562, %v684
        %686 = vdwg.mxu0
        %v687 = vand.u32 %v396, 4294901760
        %v688 = vsub.f32 %v396, %v687
        %689 = vmatprep.subr.mxu0 %v688
        %v690 = vand.u32 %v395, 4294901760
        %v691 = vsub.f32 %v395, %v690
        %692 = vmatpush1.msra.mxu0 %v691
        %v693 = vand.u32 %v400, 4294901760
        %v694 = vsub.f32 %v400, %v693
        %695 = vmatprep.subr.mxu0 %v694
        %v696 = vand.u32 %v399, 4294901760
        %v697 = vsub.f32 %v399, %v696
        %698 = vmatpush1.msra.mxu0 %v697
        %v699 = vand.u32 %v441, 4294901760
        %v700 = vsub.f32 %v441, %v699
        %701 = vmatprep.subr.mxu0 %v700
        %v702 = vand.u32 %v438, 4294901760
        %v703 = vsub.f32 %v438, %v702
        %704 = vmatpush1.msra.mxu0 %v703
        %705 = vmatprep.subr.mxu0 0.0
        %706 = vmatpush1.msra.mxu0 0.0
        %707 = vmatprep.subr.mxu0 0.0
        %708 = vmatpush1.msra.mxu0 0.0
        %709 = vmatprep.subr.mxu0 0.0
        %710 = vmatpush1.msra.mxu0 0.0
        %711 = vmatprep.subr.mxu0 0.0
        %712 = vmatpush1.msra.mxu0 0.0
        %713 = vmatprep.subr.mxu0 0.0
        %714 = vmatpush1.msra.mxu0 0.0
        %715 = vmatprep.subr.mxu0 0.0
        %716 = vmatpush1.msra.mxu0 0.0
        %717 = vmatprep.subr.mxu0 0.0
        %718 = vmatpush1.msra.mxu0 0.0
        %719 = vmatprep.subr.mxu0 0.0
        %720 = vmatpush1.msra.mxu0 0.0
        %721 = vmatprep.subr.mxu0 0.0
        %722 = vmatpush1.msra.mxu0 0.0
        %723 = vmatprep.subr.mxu0 0.0
        %724 = vmatpush1.msra.mxu0 0.0
        %725 = vmatprep.subr.mxu0 0.0
        %726 = vmatpush1.msra.mxu0 0.0
        %727 = vmatprep.subr.mxu0 0.0
        %728 = vmatpush1.msra.mxu0 0.0
        %729 = vmatprep.subr.mxu0 0.0
        %730 = vmatpush1.msra.mxu0 0.0
        %731 = vmatprep.subr.mxu0 0.0
        %732 = vmatpush1.msra.mxu0 0.0
        %733 = vmatprep.subr.mxu0 0.0
        %734 = vmatpush1.msra.mxu0 0.0
        %735 = vmatprep.subr.mxu0 0.0
        %736 = vmatpush1.msra.mxu0 0.0
        %737 = vmatprep.subr.mxu0 0.0
        %738 = vmatpush1.msra.mxu0 0.0
        %739 = vmatprep.subr.mxu0 0.0
        %740 = vmatpush1.msra.mxu0 0.0
        %741 = vmatprep.subr.mxu0 0.0
        %742 = vmatpush1.msra.mxu0 0.0
        %743 = vmatprep.subr.mxu0 0.0
        %744 = vmatpush1.msra.mxu0 0.0
        %745 = vmatprep.subr.mxu0 0.0
        %746 = vmatpush1.msra.mxu0 0.0
        %747 = vmatprep.subr.mxu0 0.0
        %748 = vmatpush1.msra.mxu0 0.0
        %749 = vmatprep.subr.mxu0 0.0
        %750 = vmatpush1.msra.mxu0 0.0
        %751 = vmatprep.subr.mxu0 0.0
        %752 = vmatpush1.msra.mxu0 0.0
        %753 = vmatprep.subr.mxu0 0.0
        %754 = vmatpush1.msra.mxu0 0.0
        %755 = vmatprep.subr.mxu0 0.0
        %756 = vmatpush1.msra.mxu0 0.0
        %757 = vmatprep.subr.mxu0 0.0
        %758 = vmatpush1.msra.mxu0 0.0
        %759 = vmatprep.subr.mxu0 0.0
        %760 = vmatpush1.msra.mxu0 0.0
        %761 = vmatprep.subr.mxu0 0.0
        %762 = vmatpush1.msra.mxu0 0.0
        %763 = vmatprep.mubr.f32.mxu0 0.0
        %v764 = vand.u32 %v428, 4294901760
        %v765 = vsub.f32 %v428, %v764
        %766 = vmatmul.mubr.f32.gmra.mrb[0].mxu0 %v765
        %v767 = vpop.f32.mrb[0].mxu0
        %v768 = vadd.f32 %v662, %v767
        %v769 = vpop.f32.mrb[0].mxu0
        %v770 = vadd.f32 %v664, %v769
        %771 = vmatprep.mubr.f32.mxu0 0.0
        %v772 = vand.u32 %v430, 4294901760
        %v773 = vsub.f32 %v430, %v772
        %774 = vmatmul.mubr.f32.gmra.mrb[0].mxu0 %v773
        %v775 = vpop.f32.mrb[0].mxu0
        %v776 = vadd.f32 %v669, %v775
        %v777 = vpop.f32.mrb[0].mxu0
        %v778 = vadd.f32 %v671, %v777
        %779 = vmatprep.mubr.f32.mxu0 0.0
        %v780 = vand.u32 %v432, 4294901760
        %v781 = vsub.f32 %v432, %v780
        %782 = vmatmul.mubr.f32.gmra.mrb[0].mxu0 %v781
        %v783 = vpop.f32.mrb[0].mxu0
        %v784 = vadd.f32 %v676, %v783
        %v785 = vpop.f32.mrb[0].mxu0
        %v786 = vadd.f32 %v678, %v785
        %787 = vmatprep.mubr.f32.mxu0 0.0
        %v788 = vand.u32 %v434, 4294901760
        %v789 = vsub.f32 %v434, %v788
        %790 = vmatmul.mubr.f32.gmra.mrb[0].mxu0 %v789
        %v791 = vpop.f32.mrb[0].mxu0
        %v792 = vadd.f32 %v683, %v791
        %v793 = vpop.f32.mrb[0].mxu0
        %v794 = vadd.f32 %v685, %v793
        %795 = vdwg.mxu0
        %v796 = vand.u32 %v396, 4294901760
        %797 = vmatprep.subr.mxu0 %v796
        %v798 = vand.u32 %v395, 4294901760
        %799 = vmatpush1.msra.mxu0 %v798
        %v800 = vand.u32 %v400, 4294901760
        %801 = vmatprep.subr.mxu0 %v800
        %v802 = vand.u32 %v399, 4294901760
        %803 = vmatpush1.msra.mxu0 %v802
        %v804 = vand.u32 %v441, 4294901760
        %805 = vmatprep.subr.mxu0 %v804
        %v806 = vand.u32 %v438, 4294901760
        %807 = vmatpush1.msra.mxu0 %v806
        %808 = vmatprep.subr.mxu0 0.0
        %809 = vmatpush1.msra.mxu0 0.0
        %810 = vmatprep.subr.mxu0 0.0
        %811 = vmatpush1.msra.mxu0 0.0
        %812 = vmatprep.subr.mxu0 0.0
        %813 = vmatpush1.msra.mxu0 0.0
        %814 = vmatprep.subr.mxu0 0.0
        %815 = vmatpush1.msra.mxu0 0.0
        %816 = vmatprep.subr.mxu0 0.0
        %817 = vmatpush1.msra.mxu0 0.0
        %818 = vmatprep.subr.mxu0 0.0
        %819 = vmatpush1.msra.mxu0 0.0
        %820 = vmatprep.subr.mxu0 0.0
        %821 = vmatpush1.msra.mxu0 0.0
        %822 = vmatprep.subr.mxu0 0.0
        %823 = vmatpush1.msra.mxu0 0.0
        %824 = vmatprep.subr.mxu0 0.0
        %825 = vmatpush1.msra.mxu0 0.0
        %826 = vmatprep.subr.mxu0 0.0
        %827 = vmatpush1.msra.mxu0 0.0
        %828 = vmatprep.subr.mxu0 0.0
        %829 = vmatpush1.msra.mxu0 0.0
        %830 = vmatprep.subr.mxu0 0.0
        %831 = vmatpush1.msra.mxu0 0.0
        %832 = vmatprep.subr.mxu0 0.0
        %833 = vmatpush1.msra.mxu0 0.0
        %834 = vmatprep.subr.mxu0 0.0
        %835 = vmatpush1.msra.mxu0 0.0
        %836 = vmatprep.subr.mxu0 0.0
        %837 = vmatpush1.msra.mxu0 0.0
        %838 = vmatprep.subr.mxu0 0.0
        %839 = vmatpush1.msra.mxu0 0.0
        %840 = vmatprep.subr.mxu0 0.0
        %841 = vmatpush1.msra.mxu0 0.0
        %842 = vmatprep.subr.mxu0 0.0
        %843 = vmatpush1.msra.mxu0 0.0
        %844 = vmatprep.subr.mxu0 0.0
        %845 = vmatpush1.msra.mxu0 0.0
        %846 = vmatprep.subr.mxu0 0.0
        %847 = vmatpush1.msra.mxu0 0.0
        %848 = vmatprep.subr.mxu0 0.0
        %849 = vmatpush1.msra.mxu0 0.0
        %850 = vmatprep.subr.mxu0 0.0
        %851 = vmatpush1.msra.mxu0 0.0
        %852 = vmatprep.subr.mxu0 0.0
        %853 = vmatpush1.msra.mxu0 0.0
        %854 = vmatprep.subr.mxu0 0.0
        %855 = vmatpush1.msra.mxu0 0.0
        %856 = vmatprep.subr.mxu0 0.0
        %857 = vmatpush1.msra.mxu0 0.0
        %858 = vmatprep.subr.mxu0 0.0
        %859 = vmatpush1.msra.mxu0 0.0
        %860 = vmatprep.subr.mxu0 0.0
        %861 = vmatpush1.msra.mxu0 0.0
        %862 = vmatprep.subr.mxu0 0.0
        %863 = vmatpush1.msra.mxu0 0.0
        %864 = vmatprep.subr.mxu0 0.0
        %865 = vmatpush1.msra.mxu0 0.0
        %866 = vmatprep.mubr.f32.mxu0 0.0
        %v867 = vand.u32 %v428, 4294901760
        %v868 = vsub.f32 %v428, %v867
        %v869 = vand.u32 %v868, 4294901760
        %870 = vmatmul.mubr.f32.gmra.mrb[0].mxu0 %v869
        %v871 = vpop.f32.mrb[0].mxu0
        %v872 = vadd.f32 %v768, %v871
        %v873 = vpop.f32.mrb[0].mxu0
        %v874 = vadd.f32 %v770, %v873
        %875 = vmatprep.mubr.f32.mxu0 0.0
        %v876 = vand.u32 %v430, 4294901760
        %v877 = vsub.f32 %v430, %v876
        %v878 = vand.u32 %v877, 4294901760
        %879 = vmatmul.mubr.f32.gmra.mrb[0].mxu0 %v878
        %v880 = vpop.f32.mrb[0].mxu0
        %v881 = vadd.f32 %v776, %v880
        %v882 = vpop.f32.mrb[0].mxu0
        %v883 = vadd.f32 %v778, %v882
        %884 = vmatprep.mubr.f32.mxu0 0.0
        %v885 = vand.u32 %v432, 4294901760
        %v886 = vsub.f32 %v432, %v885
        %v887 = vand.u32 %v886, 4294901760
        %888 = vmatmul.mubr.f32.gmra.mrb[0].mxu0 %v887
        %v889 = vpop.f32.mrb[0].mxu0
        %v890 = vadd.f32 %v784, %v889
        %v891 = vpop.f32.mrb[0].mxu0
        %v892 = vadd.f32 %v786, %v891
        %893 = vmatprep.mubr.f32.mxu0 0.0
        %v894 = vand.u32 %v434, 4294901760
        %v895 = vsub.f32 %v434, %v894
        %v896 = vand.u32 %v895, 4294901760
        %897 = vmatmul.mubr.f32.gmra.mrb[0].mxu0 %v896
        %v898 = vpop.f32.mrb[0].mxu0
        %v899 = vadd.f32 %v792, %v898
        %v900 = vpop.f32.mrb[0].mxu0
        %v901 = vadd.f32 %v794, %v900
        %902 = vdwg.mxu0
        %v903 = vand.u32 %v396, 4294901760
        %v904 = vsub.f32 %v396, %v903
        %v905 = vand.u32 %v904, 4294901760
        %906 = vmatprep.subr.mxu0 %v905
        %v907 = vand.u32 %v395, 4294901760
        %v908 = vsub.f32 %v395, %v907
        %v909 = vand.u32 %v908, 4294901760
        %910 = vmatpush1.msra.mxu0 %v909
        %v911 = vand.u32 %v400, 4294901760
        %v912 = vsub.f32 %v400, %v911
        %v913 = vand.u32 %v912, 4294901760
        %914 = vmatprep.subr.mxu0 %v913
        %v915 = vand.u32 %v399, 4294901760
        %v916 = vsub.f32 %v399, %v915
        %v917 = vand.u32 %v916, 4294901760
        %918 = vmatpush1.msra.mxu0 %v917
        %v919 = vand.u32 %v441, 4294901760
        %v920 = vsub.f32 %v441, %v919
        %v921 = vand.u32 %v920, 4294901760
        %922 = vmatprep.subr.mxu0 %v921
        %v923 = vand.u32 %v438, 4294901760
        %v924 = vsub.f32 %v438, %v923
        %v925 = vand.u32 %v924, 4294901760
        %926 = vmatpush1.msra.mxu0 %v925
        %927 = vmatprep.subr.mxu0 0.0
        %928 = vmatpush1.msra.mxu0 0.0
        %929 = vmatprep.subr.mxu0 0.0
        %930 = vmatpush1.msra.mxu0 0.0
        %931 = vmatprep.subr.mxu0 0.0
        %932 = vmatpush1.msra.mxu0 0.0
        %933 = vmatprep.subr.mxu0 0.0
        %934 = vmatpush1.msra.mxu0 0.0
        %935 = vmatprep.subr.mxu0 0.0
        %936 = vmatpush1.msra.mxu0 0.0
        %937 = vmatprep.subr.mxu0 0.0
        %938 = vmatpush1.msra.mxu0 0.0
        %939 = vmatprep.subr.mxu0 0.0
        %940 = vmatpush1.msra.mxu0 0.0
        %941 = vmatprep.subr.mxu0 0.0
        %942 = vmatpush1.msra.mxu0 0.0
        %943 = vmatprep.subr.mxu0 0.0
        %944 = vmatpush1.msra.mxu0 0.0
        %945 = vmatprep.subr.mxu0 0.0
        %946 = vmatpush1.msra.mxu0 0.0
        %947 = vmatprep.subr.mxu0 0.0
        %948 = vmatpush1.msra.mxu0 0.0
        %949 = vmatprep.subr.mxu0 0.0
        %950 = vmatpush1.msra.mxu0 0.0
        %951 = vmatprep.subr.mxu0 0.0
        %952 = vmatpush1.msra.mxu0 0.0
        %953 = vmatprep.subr.mxu0 0.0
        %954 = vmatpush1.msra.mxu0 0.0
        %955 = vmatprep.subr.mxu0 0.0
        %956 = vmatpush1.msra.mxu0 0.0
        %957 = vmatprep.subr.mxu0 0.0
        %958 = vmatpush1.msra.mxu0 0.0
        %959 = vmatprep.subr.mxu0 0.0
        %960 = vmatpush1.msra.mxu0 0.0
        %961 = vmatprep.subr.mxu0 0.0
        %962 = vmatpush1.msra.mxu0 0.0
        %963 = vmatprep.subr.mxu0 0.0
        %964 = vmatpush1.msra.mxu0 0.0
        %965 = vmatprep.subr.mxu0 0.0
        %966 = vmatpush1.msra.mxu0 0.0
        %967 = vmatprep.subr.mxu0 0.0
        %968 = vmatpush1.msra.mxu0 0.0
        %969 = vmatprep.subr.mxu0 0.0
        %970 = vmatpush1.msra.mxu0 0.0
        %971 = vmatprep.subr.mxu0 0.0
        %972 = vmatpush1.msra.mxu0 0.0
        %973 = vmatprep.subr.mxu0 0.0
        %974 = vmatpush1.msra.mxu0 0.0
        %975 = vmatprep.subr.mxu0 0.0
        %976 = vmatpush1.msra.mxu0 0.0
        %977 = vmatprep.subr.mxu0 0.0
        %978 = vmatpush1.msra.mxu0 0.0
        %979 = vmatprep.subr.mxu0 0.0
        %980 = vmatpush1.msra.mxu0 0.0
        %981 = vmatprep.subr.mxu0 0.0
        %982 = vmatpush1.msra.mxu0 0.0
        %983 = vmatprep.subr.mxu0 0.0
        %984 = vmatpush1.msra.mxu0 0.0
        %985 = vmatprep.mubr.f32.mxu0 0.0
        %v986 = vand.u32 %v428, 4294901760
        %987 = vmatmul.mubr.f32.gmra.mrb[0].mxu0 %v986
        %v988 = vpop.f32.mrb[0].mxu0
        %v989 = vadd.f32 %v872, %v988
        %v990 = vpop.f32.mrb[0].mxu0
        %v991 = vadd.f32 %v874, %v990
        %992 = vmatprep.mubr.f32.mxu0 0.0
        %v993 = vand.u32 %v430, 4294901760
        %994 = vmatmul.mubr.f32.gmra.mrb[0].mxu0 %v993
        %v995 = vpop.f32.mrb[0].mxu0
        %v996 = vadd.f32 %v881, %v995
        %v997 = vpop.f32.mrb[0].mxu0
        %v998 = vadd.f32 %v883, %v997
        %999 = vmatprep.mubr.f32.mxu0 0.0
        %v1000 = vand.u32 %v432, 4294901760
        %1001 = vmatmul.mubr.f32.gmra.mrb[0].mxu0 %v1000
        %v1002 = vpop.f32.mrb[0].mxu0
        %v1003 = vadd.f32 %v890, %v1002
        %v1004 = vpop.f32.mrb[0].mxu0
        %v1005 = vadd.f32 %v892, %v1004
        %1006 = vmatprep.mubr.f32.mxu0 0.0
        %v1007 = vand.u32 %v434, 4294901760
        %1008 = vmatmul.mubr.f32.gmra.mrb[0].mxu0 %v1007
        %v1009 = vpop.f32.mrb[0].mxu0
        %v1010 = vadd.f32 %v899, %v1009
        %v1011 = vpop.f32.mrb[0].mxu0
        %v1012 = vadd.f32 %v901, %v1011
        %1013 = vdwg.mxu0
        %v1014 = vand.u32 %v396, 4294901760
        %1015 = vmatprep.subr.mxu0 %v1014
        %v1016 = vand.u32 %v395, 4294901760
        %1017 = vmatpush1.msra.mxu0 %v1016
        %v1018 = vand.u32 %v400, 4294901760
        %1019 = vmatprep.subr.mxu0 %v1018
        %v1020 = vand.u32 %v399, 4294901760
        %1021 = vmatpush1.msra.mxu0 %v1020
        %v1022 = vand.u32 %v441, 4294901760
        %1023 = vmatprep.subr.mxu0 %v1022
        %v1024 = vand.u32 %v438, 4294901760
        %1025 = vmatpush1.msra.mxu0 %v1024
        %1026 = vmatprep.subr.mxu0 0.0
        %1027 = vmatpush1.msra.mxu0 0.0
        %1028 = vmatprep.subr.mxu0 0.0
        %1029 = vmatpush1.msra.mxu0 0.0
        %1030 = vmatprep.subr.mxu0 0.0
        %1031 = vmatpush1.msra.mxu0 0.0
        %1032 = vmatprep.subr.mxu0 0.0
        %1033 = vmatpush1.msra.mxu0 0.0
        %1034 = vmatprep.subr.mxu0 0.0
        %1035 = vmatpush1.msra.mxu0 0.0
        %1036 = vmatprep.subr.mxu0 0.0
        %1037 = vmatpush1.msra.mxu0 0.0
        %1038 = vmatprep.subr.mxu0 0.0
        %1039 = vmatpush1.msra.mxu0 0.0
        %1040 = vmatprep.subr.mxu0 0.0
        %1041 = vmatpush1.msra.mxu0 0.0
        %1042 = vmatprep.subr.mxu0 0.0
        %1043 = vmatpush1.msra.mxu0 0.0
        %1044 = vmatprep.subr.mxu0 0.0
        %1045 = vmatpush1.msra.mxu0 0.0
        %1046 = vmatprep.subr.mxu0 0.0
        %1047 = vmatpush1.msra.mxu0 0.0
        %1048 = vmatprep.subr.mxu0 0.0
        %1049 = vmatpush1.msra.mxu0 0.0
        %1050 = vmatprep.subr.mxu0 0.0
        %1051 = vmatpush1.msra.mxu0 0.0
        %1052 = vmatprep.subr.mxu0 0.0
        %1053 = vmatpush1.msra.mxu0 0.0
        %1054 = vmatprep.subr.mxu0 0.0
        %1055 = vmatpush1.msra.mxu0 0.0
        %1056 = vmatprep.subr.mxu0 0.0
        %1057 = vmatpush1.msra.mxu0 0.0
        %1058 = vmatprep.subr.mxu0 0.0
        %1059 = vmatpush1.msra.mxu0 0.0
        %1060 = vmatprep.subr.mxu0 0.0
        %1061 = vmatpush1.msra.mxu0 0.0
        %1062 = vmatprep.subr.mxu0 0.0
        %1063 = vmatpush1.msra.mxu0 0.0
        %1064 = vmatprep.subr.mxu0 0.0
        %1065 = vmatpush1.msra.mxu0 0.0
        %1066 = vmatprep.subr.mxu0 0.0
        %1067 = vmatpush1.msra.mxu0 0.0
        %1068 = vmatprep.subr.mxu0 0.0
        %1069 = vmatpush1.msra.mxu0 0.0
        %1070 = vmatprep.subr.mxu0 0.0
        %1071 = vmatpush1.msra.mxu0 0.0
        %1072 = vmatprep.subr.mxu0 0.0
        %1073 = vmatpush1.msra.mxu0 0.0
        %1074 = vmatprep.subr.mxu0 0.0
        %1075 = vmatpush1.msra.mxu0 0.0
        %1076 = vmatprep.subr.mxu0 0.0
        %1077 = vmatpush1.msra.mxu0 0.0
        %1078 = vmatprep.subr.mxu0 0.0
        %1079 = vmatpush1.msra.mxu0 0.0
        %1080 = vmatprep.subr.mxu0 0.0
        %1081 = vmatpush1.msra.mxu0 0.0
        %1082 = vmatprep.subr.mxu0 0.0
        %1083 = vmatpush1.msra.mxu0 0.0
        %1084 = vmatprep.mubr.f32.mxu0 0.0
        %v1085 = vand.u32 %v428, 4294901760
        %1086 = vmatmul.mubr.f32.gmra.mrb[0].mxu0 %v1085
        %v1087 = vpop.f32.mrb[0].mxu0
        %v1088 = vadd.f32 %v989, %v1087
        %v1089 = vpop.f32.mrb[0].mxu0
        %v1090 = vadd.f32 %v991, %v1089
        %1091 = vmatprep.mubr.f32.mxu0 0.0
        %v1092 = vand.u32 %v430, 4294901760
        %1093 = vmatmul.mubr.f32.gmra.mrb[0].mxu0 %v1092
        %v1094 = vpop.f32.mrb[0].mxu0
        %v1095 = vadd.f32 %v996, %v1094
        %v1096 = vpop.f32.mrb[0].mxu0
        %v1097 = vadd.f32 %v998, %v1096
        %1098 = vmatprep.mubr.f32.mxu0 0.0
        %v1099 = vand.u32 %v432, 4294901760
        %1100 = vmatmul.mubr.f32.gmra.mrb[0].mxu0 %v1099
        %v1101 = vpop.f32.mrb[0].mxu0
        %v1102 = vadd.f32 %v1003, %v1101
        %v1103 = vpop.f32.mrb[0].mxu0
        %v1104 = vadd.f32 %v1005, %v1103
        %1105 = vmatprep.mubr.f32.mxu0 0.0
        %v1106 = vand.u32 %v434, 4294901760
        %1107 = vmatmul.mubr.f32.gmra.mrb[0].mxu0 %v1106
        %v1108 = vpop.f32.mrb[0].mxu0
        %v1109 = vadd.f32 %v1010, %v1108
        %v1110 = vpop.f32.mrb[0].mxu0
        %v1111 = vadd.f32 %v1012, %v1110
        %1112 = vdwg.mxu0
        %v1113 = vand.u32 %v398, 4294901760
        %1114 = vmatprep.subr.mxu0 %v1113
        %v1115 = vand.u32 %v397, 4294901760
        %1116 = vmatpush1.msra.mxu0 %v1115
        %v1117 = vand.u32 %v402, 4294901760
        %1118 = vmatprep.subr.mxu0 %v1117
        %v1119 = vand.u32 %v401, 4294901760
        %1120 = vmatpush1.msra.mxu0 %v1119
        %v1121 = vand.u32 %v447, 4294901760
        %1122 = vmatprep.subr.mxu0 %v1121
        %v1123 = vand.u32 %v444, 4294901760
        %1124 = vmatpush1.msra.mxu0 %v1123
        %1125 = vmatprep.subr.mxu0 0.0
        %1126 = vmatpush1.msra.mxu0 0.0
        %1127 = vmatprep.subr.mxu0 0.0
        %1128 = vmatpush1.msra.mxu0 0.0
        %1129 = vmatprep.subr.mxu0 0.0
        %1130 = vmatpush1.msra.mxu0 0.0
        %1131 = vmatprep.subr.mxu0 0.0
        %1132 = vmatpush1.msra.mxu0 0.0
        %1133 = vmatprep.subr.mxu0 0.0
        %1134 = vmatpush1.msra.mxu0 0.0
        %1135 = vmatprep.subr.mxu0 0.0
        %1136 = vmatpush1.msra.mxu0 0.0
        %1137 = vmatprep.subr.mxu0 0.0
        %1138 = vmatpush1.msra.mxu0 0.0
        %1139 = vmatprep.subr.mxu0 0.0
        %1140 = vmatpush1.msra.mxu0 0.0
        %1141 = vmatprep.subr.mxu0 0.0
        %1142 = vmatpush1.msra.mxu0 0.0
        %1143 = vmatprep.subr.mxu0 0.0
        %1144 = vmatpush1.msra.mxu0 0.0
        %1145 = vmatprep.subr.mxu0 0.0
        %1146 = vmatpush1.msra.mxu0 0.0
        %1147 = vmatprep.subr.mxu0 0.0
        %1148 = vmatpush1.msra.mxu0 0.0
        %1149 = vmatprep.subr.mxu0 0.0
        %1150 = vmatpush1.msra.mxu0 0.0
        %1151 = vmatprep.subr.mxu0 0.0
        %1152 = vmatpush1.msra.mxu0 0.0
        %1153 = vmatprep.subr.mxu0 0.0
        %1154 = vmatpush1.msra.mxu0 0.0
        %1155 = vmatprep.subr.mxu0 0.0
        %1156 = vmatpush1.msra.mxu0 0.0
        %1157 = vmatprep.subr.mxu0 0.0
        %1158 = vmatpush1.msra.mxu0 0.0
        %1159 = vmatprep.subr.mxu0 0.0
        %1160 = vmatpush1.msra.mxu0 0.0
        %1161 = vmatprep.subr.mxu0 0.0
        %1162 = vmatpush1.msra.mxu0 0.0
        %1163 = vmatprep.subr.mxu0 0.0
        %1164 = vmatpush1.msra.mxu0 0.0
        %1165 = vmatprep.subr.mxu0 0.0
        %1166 = vmatpush1.msra.mxu0 0.0
        %1167 = vmatprep.subr.mxu0 0.0
        %1168 = vmatpush1.msra.mxu0 0.0
        %1169 = vmatprep.subr.mxu0 0.0
        %1170 = vmatpush1.msra.mxu0 0.0
        %1171 = vmatprep.subr.mxu0 0.0
        %1172 = vmatpush1.msra.mxu0 0.0
        %1173 = vmatprep.subr.mxu0 0.0
        %1174 = vmatpush1.msra.mxu0 0.0
        %1175 = vmatprep.subr.mxu0 0.0
        %1176 = vmatpush1.msra.mxu0 0.0
        %1177 = vmatprep.subr.mxu0 0.0
        %1178 = vmatpush1.msra.mxu0 0.0
        %1179 = vmatprep.subr.mxu0 0.0
        %1180 = vmatpush1.msra.mxu0 0.0
        %1181 = vmatprep.subr.mxu0 0.0
        %1182 = vmatpush1.msra.mxu0 0.0
        %1183 = vmatprep.mubr.f32.mxu0 0.0
        %v1184 = vand.u32 %v428, 4294901760
        %v1185 = vsub.f32 %v428, %v1184
        %v1186 = vand.u32 %v1185, 4294901760
        %v1187 = vsub.f32 %v1185, %v1186
        %v1188 = vand.u32 %v1187, 4294901760
        %1189 = vmatmul.mubr.f32.gmra.mrb[0].mxu0 %v1188
        %v1190 = vpop.f32.mrb[0].mxu0
        %v1191 = vadd.f32 %v410, %v1190
        %v1192 = vpop.f32.mrb[0].mxu0
        %v1193 = vadd.f32 %v410, %v1192
        %1194 = vmatprep.mubr.f32.mxu0 0.0
        %v1195 = vand.u32 %v430, 4294901760
        %v1196 = vsub.f32 %v430, %v1195
        %v1197 = vand.u32 %v1196, 4294901760
        %v1198 = vsub.f32 %v1196, %v1197
        %v1199 = vand.u32 %v1198, 4294901760
        %1200 = vmatmul.mubr.f32.gmra.mrb[0].mxu0 %v1199
        %v1201 = vpop.f32.mrb[0].mxu0
        %v1202 = vadd.f32 %v415, %v1201
        %v1203 = vpop.f32.mrb[0].mxu0
        %v1204 = vadd.f32 %v415, %v1203
        %1205 = vmatprep.mubr.f32.mxu0 0.0
        %v1206 = vand.u32 %v432, 4294901760
        %v1207 = vsub.f32 %v432, %v1206
        %v1208 = vand.u32 %v1207, 4294901760
        %v1209 = vsub.f32 %v1207, %v1208
        %v1210 = vand.u32 %v1209, 4294901760
        %1211 = vmatmul.mubr.f32.gmra.mrb[0].mxu0 %v1210
        %v1212 = vpop.f32.mrb[0].mxu0
        %v1213 = vadd.f32 %v420, %v1212
        %v1214 = vpop.f32.mrb[0].mxu0
        %v1215 = vadd.f32 %v420, %v1214
        %1216 = vmatprep.mubr.f32.mxu0 0.0
        %v1217 = vand.u32 %v434, 4294901760
        %v1218 = vsub.f32 %v434, %v1217
        %v1219 = vand.u32 %v1218, 4294901760
        %v1220 = vsub.f32 %v1218, %v1219
        %v1221 = vand.u32 %v1220, 4294901760
        %1222 = vmatmul.mubr.f32.gmra.mrb[0].mxu0 %v1221
        %v1223 = vpop.f32.mrb[0].mxu0
        %v1224 = vadd.f32 %v425, %v1223
        %v1225 = vpop.f32.mrb[0].mxu0
        %v1226 = vadd.f32 %v425, %v1225
        %1227 = vdwg.mxu0
        %v1228 = vand.u32 %v398, 4294901760
        %v1229 = vsub.f32 %v398, %v1228
        %v1230 = vand.u32 %v1229, 4294901760
        %v1231 = vsub.f32 %v1229, %v1230
        %v1232 = vand.u32 %v1231, 4294901760
        %1233 = vmatprep.subr.mxu0 %v1232
        %v1234 = vand.u32 %v397, 4294901760
        %v1235 = vsub.f32 %v397, %v1234
        %v1236 = vand.u32 %v1235, 4294901760
        %v1237 = vsub.f32 %v1235, %v1236
        %v1238 = vand.u32 %v1237, 4294901760
        %1239 = vmatpush1.msra.mxu0 %v1238
        %v1240 = vand.u32 %v402, 4294901760
        %v1241 = vsub.f32 %v402, %v1240
        %v1242 = vand.u32 %v1241, 4294901760
        %v1243 = vsub.f32 %v1241, %v1242
        %v1244 = vand.u32 %v1243, 4294901760
        %1245 = vmatprep.subr.mxu0 %v1244
        %v1246 = vand.u32 %v401, 4294901760
        %v1247 = vsub.f32 %v401, %v1246
        %v1248 = vand.u32 %v1247, 4294901760
        %v1249 = vsub.f32 %v1247, %v1248
        %v1250 = vand.u32 %v1249, 4294901760
        %1251 = vmatpush1.msra.mxu0 %v1250
        %v1252 = vand.u32 %v447, 4294901760
        %v1253 = vsub.f32 %v447, %v1252
        %v1254 = vand.u32 %v1253, 4294901760
        %v1255 = vsub.f32 %v1253, %v1254
        %v1256 = vand.u32 %v1255, 4294901760
        %1257 = vmatprep.subr.mxu0 %v1256
        %v1258 = vand.u32 %v444, 4294901760
        %v1259 = vsub.f32 %v444, %v1258
        %v1260 = vand.u32 %v1259, 4294901760
        %v1261 = vsub.f32 %v1259, %v1260
        %v1262 = vand.u32 %v1261, 4294901760
        %1263 = vmatpush1.msra.mxu0 %v1262
        %1264 = vmatprep.subr.mxu0 0.0
        %1265 = vmatpush1.msra.mxu0 0.0
        %1266 = vmatprep.subr.mxu0 0.0
        %1267 = vmatpush1.msra.mxu0 0.0
        %1268 = vmatprep.subr.mxu0 0.0
        %1269 = vmatpush1.msra.mxu0 0.0
        %1270 = vmatprep.subr.mxu0 0.0
        %1271 = vmatpush1.msra.mxu0 0.0
        %1272 = vmatprep.subr.mxu0 0.0
        %1273 = vmatpush1.msra.mxu0 0.0
        %1274 = vmatprep.subr.mxu0 0.0
        %1275 = vmatpush1.msra.mxu0 0.0
        %1276 = vmatprep.subr.mxu0 0.0
        %1277 = vmatpush1.msra.mxu0 0.0
        %1278 = vmatprep.subr.mxu0 0.0
        %1279 = vmatpush1.msra.mxu0 0.0
        %1280 = vmatprep.subr.mxu0 0.0
        %1281 = vmatpush1.msra.mxu0 0.0
        %1282 = vmatprep.subr.mxu0 0.0
        %1283 = vmatpush1.msra.mxu0 0.0
        %1284 = vmatprep.subr.mxu0 0.0
        %1285 = vmatpush1.msra.mxu0 0.0
        %1286 = vmatprep.subr.mxu0 0.0
        %1287 = vmatpush1.msra.mxu0 0.0
        %1288 = vmatprep.subr.mxu0 0.0
        %1289 = vmatpush1.msra.mxu0 0.0
        %1290 = vmatprep.subr.mxu0 0.0
        %1291 = vmatpush1.msra.mxu0 0.0
        %1292 = vmatprep.subr.mxu0 0.0
        %1293 = vmatpush1.msra.mxu0 0.0
        %1294 = vmatprep.subr.mxu0 0.0
        %1295 = vmatpush1.msra.mxu0 0.0
        %1296 = vmatprep.subr.mxu0 0.0
        %1297 = vmatpush1.msra.mxu0 0.0
        %1298 = vmatprep.subr.mxu0 0.0
        %1299 = vmatpush1.msra.mxu0 0.0
        %1300 = vmatprep.subr.mxu0 0.0
        %1301 = vmatpush1.msra.mxu0 0.0
        %1302 = vmatprep.subr.mxu0 0.0
        %1303 = vmatpush1.msra.mxu0 0.0
        %1304 = vmatprep.subr.mxu0 0.0
        %1305 = vmatpush1.msra.mxu0 0.0
        %1306 = vmatprep.subr.mxu0 0.0
        %1307 = vmatpush1.msra.mxu0 0.0
        %1308 = vmatprep.subr.mxu0 0.0
        %1309 = vmatpush1.msra.mxu0 0.0
        %1310 = vmatprep.subr.mxu0 0.0
        %1311 = vmatpush1.msra.mxu0 0.0
        %1312 = vmatprep.subr.mxu0 0.0
        %1313 = vmatpush1.msra.mxu0 0.0
        %1314 = vmatprep.subr.mxu0 0.0
        %1315 = vmatpush1.msra.mxu0 0.0
        %1316 = vmatprep.subr.mxu0 0.0
        %1317 = vmatpush1.msra.mxu0 0.0
        %1318 = vmatprep.subr.mxu0 0.0
        %1319 = vmatpush1.msra.mxu0 0.0
        %1320 = vmatprep.subr.mxu0 0.0
        %1321 = vmatpush1.msra.mxu0 0.0
        %1322 = vmatprep.mubr.f32.mxu0 0.0
        %v1323 = vand.u32 %v428, 4294901760
        %1324 = vmatmul.mubr.f32.gmra.mrb[0].mxu0 %v1323
        %v1325 = vpop.f32.mrb[0].mxu0
        %v1326 = vadd.f32 %v1191, %v1325
        %v1327 = vpop.f32.mrb[0].mxu0
        %v1328 = vadd.f32 %v1193, %v1327
        %1329 = vmatprep.mubr.f32.mxu0 0.0
        %v1330 = vand.u32 %v430, 4294901760
        %1331 = vmatmul.mubr.f32.gmra.mrb[0].mxu0 %v1330
        %v1332 = vpop.f32.mrb[0].mxu0
        %v1333 = vadd.f32 %v1202, %v1332
        %v1334 = vpop.f32.mrb[0].mxu0
        %v1335 = vadd.f32 %v1204, %v1334
        %1336 = vmatprep.mubr.f32.mxu0 0.0
        %v1337 = vand.u32 %v432, 4294901760
        %1338 = vmatmul.mubr.f32.gmra.mrb[0].mxu0 %v1337
        %v1339 = vpop.f32.mrb[0].mxu0
        %v1340 = vadd.f32 %v1213, %v1339
        %v1341 = vpop.f32.mrb[0].mxu0
        %v1342 = vadd.f32 %v1215, %v1341
        %1343 = vmatprep.mubr.f32.mxu0 0.0
        %v1344 = vand.u32 %v434, 4294901760
        %1345 = vmatmul.mubr.f32.gmra.mrb[0].mxu0 %v1344
        %v1346 = vpop.f32.mrb[0].mxu0
        %v1347 = vadd.f32 %v1224, %v1346
        %v1348 = vpop.f32.mrb[0].mxu0
        %v1349 = vadd.f32 %v1226, %v1348
        %1350 = vdwg.mxu0
        %v1351 = vand.u32 %v398, 4294901760
        %v1352 = vsub.f32 %v398, %v1351
        %1353 = vmatprep.subr.mxu0 %v1352
        %v1354 = vand.u32 %v397, 4294901760
        %v1355 = vsub.f32 %v397, %v1354
        %1356 = vmatpush1.msra.mxu0 %v1355
        %v1357 = vand.u32 %v402, 4294901760
        %v1358 = vsub.f32 %v402, %v1357
        %1359 = vmatprep.subr.mxu0 %v1358
        %v1360 = vand.u32 %v401, 4294901760
        %v1361 = vsub.f32 %v401, %v1360
        %1362 = vmatpush1.msra.mxu0 %v1361
        %v1363 = vand.u32 %v447, 4294901760
        %v1364 = vsub.f32 %v447, %v1363
        %1365 = vmatprep.subr.mxu0 %v1364
        %v1366 = vand.u32 %v444, 4294901760
        %v1367 = vsub.f32 %v444, %v1366
        %1368 = vmatpush1.msra.mxu0 %v1367
        %1369 = vmatprep.subr.mxu0 0.0
        %1370 = vmatpush1.msra.mxu0 0.0
        %1371 = vmatprep.subr.mxu0 0.0
        %1372 = vmatpush1.msra.mxu0 0.0
        %1373 = vmatprep.subr.mxu0 0.0
        %1374 = vmatpush1.msra.mxu0 0.0
        %1375 = vmatprep.subr.mxu0 0.0
        %1376 = vmatpush1.msra.mxu0 0.0
        %1377 = vmatprep.subr.mxu0 0.0
        %1378 = vmatpush1.msra.mxu0 0.0
        %1379 = vmatprep.subr.mxu0 0.0
        %1380 = vmatpush1.msra.mxu0 0.0
        %1381 = vmatprep.subr.mxu0 0.0
        %1382 = vmatpush1.msra.mxu0 0.0
        %1383 = vmatprep.subr.mxu0 0.0
        %1384 = vmatpush1.msra.mxu0 0.0
        %1385 = vmatprep.subr.mxu0 0.0
        %1386 = vmatpush1.msra.mxu0 0.0
        %1387 = vmatprep.subr.mxu0 0.0
        %1388 = vmatpush1.msra.mxu0 0.0
        %1389 = vmatprep.subr.mxu0 0.0
        %1390 = vmatpush1.msra.mxu0 0.0
        %1391 = vmatprep.subr.mxu0 0.0
        %1392 = vmatpush1.msra.mxu0 0.0
        %1393 = vmatprep.subr.mxu0 0.0
        %1394 = vmatpush1.msra.mxu0 0.0
        %1395 = vmatprep.subr.mxu0 0.0
        %1396 = vmatpush1.msra.mxu0 0.0
        %1397 = vmatprep.subr.mxu0 0.0
        %1398 = vmatpush1.msra.mxu0 0.0
        %1399 = vmatprep.subr.mxu0 0.0
        %1400 = vmatpush1.msra.mxu0 0.0
        %1401 = vmatprep.subr.mxu0 0.0
        %1402 = vmatpush1.msra.mxu0 0.0
        %1403 = vmatprep.subr.mxu0 0.0
        %1404 = vmatpush1.msra.mxu0 0.0
        %1405 = vmatprep.subr.mxu0 0.0
        %1406 = vmatpush1.msra.mxu0 0.0
        %1407 = vmatprep.subr.mxu0 0.0
        %1408 = vmatpush1.msra.mxu0 0.0
        %1409 = vmatprep.subr.mxu0 0.0
        %1410 = vmatpush1.msra.mxu0 0.0
        %1411 = vmatprep.subr.mxu0 0.0
        %1412 = vmatpush1.msra.mxu0 0.0
        %1413 = vmatprep.subr.mxu0 0.0
        %1414 = vmatpush1.msra.mxu0 0.0
        %1415 = vmatprep.subr.mxu0 0.0
        %1416 = vmatpush1.msra.mxu0 0.0
        %1417 = vmatprep.subr.mxu0 0.0
        %1418 = vmatpush1.msra.mxu0 0.0
        %1419 = vmatprep.subr.mxu0 0.0
        %1420 = vmatpush1.msra.mxu0 0.0
        %1421 = vmatprep.subr.mxu0 0.0
        %1422 = vmatpush1.msra.mxu0 0.0
        %1423 = vmatprep.subr.mxu0 0.0
        %1424 = vmatpush1.msra.mxu0 0.0
        %1425 = vmatprep.subr.mxu0 0.0
        %1426 = vmatpush1.msra.mxu0 0.0
        %1427 = vmatprep.mubr.f32.mxu0 0.0
        %v1428 = vand.u32 %v428, 4294901760
        %v1429 = vsub.f32 %v428, %v1428
        %1430 = vmatmul.mubr.f32.gmra.mrb[0].mxu0 %v1429
        %v1431 = vpop.f32.mrb[0].mxu0
        %v1432 = vadd.f32 %v1326, %v1431
        %v1433 = vpop.f32.mrb[0].mxu0
        %v1434 = vadd.f32 %v1328, %v1433
        %1435 = vmatprep.mubr.f32.mxu0 0.0
        %v1436 = vand.u32 %v430, 4294901760
        %v1437 = vsub.f32 %v430, %v1436
        %1438 = vmatmul.mubr.f32.gmra.mrb[0].mxu0 %v1437
        %v1439 = vpop.f32.mrb[0].mxu0
        %v1440 = vadd.f32 %v1333, %v1439
        %v1441 = vpop.f32.mrb[0].mxu0
        %v1442 = vadd.f32 %v1335, %v1441
        %1443 = vmatprep.mubr.f32.mxu0 0.0
        %v1444 = vand.u32 %v432, 4294901760
        %v1445 = vsub.f32 %v432, %v1444
        %1446 = vmatmul.mubr.f32.gmra.mrb[0].mxu0 %v1445
        %v1447 = vpop.f32.mrb[0].mxu0
        %v1448 = vadd.f32 %v1340, %v1447
        %v1449 = vpop.f32.mrb[0].mxu0
        %v1450 = vadd.f32 %v1342, %v1449
        %1451 = vmatprep.mubr.f32.mxu0 0.0
        %v1452 = vand.u32 %v434, 4294901760
        %v1453 = vsub.f32 %v434, %v1452
        %1454 = vmatmul.mubr.f32.gmra.mrb[0].mxu0 %v1453
        %v1455 = vpop.f32.mrb[0].mxu0
        %v1456 = vadd.f32 %v1347, %v1455
        %v1457 = vpop.f32.mrb[0].mxu0
        %v1458 = vadd.f32 %v1349, %v1457
        %1459 = vdwg.mxu0
        %v1460 = vand.u32 %v398, 4294901760
        %1461 = vmatprep.subr.mxu0 %v1460
        %v1462 = vand.u32 %v397, 4294901760
        %1463 = vmatpush1.msra.mxu0 %v1462
        %v1464 = vand.u32 %v402, 4294901760
        %1465 = vmatprep.subr.mxu0 %v1464
        %v1466 = vand.u32 %v401, 4294901760
        %1467 = vmatpush1.msra.mxu0 %v1466
        %v1468 = vand.u32 %v447, 4294901760
        %1469 = vmatprep.subr.mxu0 %v1468
        %v1470 = vand.u32 %v444, 4294901760
        %1471 = vmatpush1.msra.mxu0 %v1470
        %1472 = vmatprep.subr.mxu0 0.0
        %1473 = vmatpush1.msra.mxu0 0.0
        %1474 = vmatprep.subr.mxu0 0.0
        %1475 = vmatpush1.msra.mxu0 0.0
        %1476 = vmatprep.subr.mxu0 0.0
        %1477 = vmatpush1.msra.mxu0 0.0
        %1478 = vmatprep.subr.mxu0 0.0
        %1479 = vmatpush1.msra.mxu0 0.0
        %1480 = vmatprep.subr.mxu0 0.0
        %1481 = vmatpush1.msra.mxu0 0.0
        %1482 = vmatprep.subr.mxu0 0.0
        %1483 = vmatpush1.msra.mxu0 0.0
        %1484 = vmatprep.subr.mxu0 0.0
        %1485 = vmatpush1.msra.mxu0 0.0
        %1486 = vmatprep.subr.mxu0 0.0
        %1487 = vmatpush1.msra.mxu0 0.0
        %1488 = vmatprep.subr.mxu0 0.0
        %1489 = vmatpush1.msra.mxu0 0.0
        %1490 = vmatprep.subr.mxu0 0.0
        %1491 = vmatpush1.msra.mxu0 0.0
        %1492 = vmatprep.subr.mxu0 0.0
        %1493 = vmatpush1.msra.mxu0 0.0
        %1494 = vmatprep.subr.mxu0 0.0
        %1495 = vmatpush1.msra.mxu0 0.0
        %1496 = vmatprep.subr.mxu0 0.0
        %1497 = vmatpush1.msra.mxu0 0.0
        %1498 = vmatprep.subr.mxu0 0.0
        %1499 = vmatpush1.msra.mxu0 0.0
        %1500 = vmatprep.subr.mxu0 0.0
        %1501 = vmatpush1.msra.mxu0 0.0
        %1502 = vmatprep.subr.mxu0 0.0
        %1503 = vmatpush1.msra.mxu0 0.0
        %1504 = vmatprep.subr.mxu0 0.0
        %1505 = vmatpush1.msra.mxu0 0.0
        %1506 = vmatprep.subr.mxu0 0.0
        %1507 = vmatpush1.msra.mxu0 0.0
        %1508 = vmatprep.subr.mxu0 0.0
        %1509 = vmatpush1.msra.mxu0 0.0
        %1510 = vmatprep.subr.mxu0 0.0
        %1511 = vmatpush1.msra.mxu0 0.0
        %1512 = vmatprep.subr.mxu0 0.0
        %1513 = vmatpush1.msra.mxu0 0.0
        %1514 = vmatprep.subr.mxu0 0.0
        %1515 = vmatpush1.msra.mxu0 0.0
        %1516 = vmatprep.subr.mxu0 0.0
        %1517 = vmatpush1.msra.mxu0 0.0
        %1518 = vmatprep.subr.mxu0 0.0
        %1519 = vmatpush1.msra.mxu0 0.0
        %1520 = vmatprep.subr.mxu0 0.0
        %1521 = vmatpush1.msra.mxu0 0.0
        %1522 = vmatprep.subr.mxu0 0.0
        %1523 = vmatpush1.msra.mxu0 0.0
        %1524 = vmatprep.subr.mxu0 0.0
        %1525 = vmatpush1.msra.mxu0 0.0
        %1526 = vmatprep.subr.mxu0 0.0
        %1527 = vmatpush1.msra.mxu0 0.0
        %1528 = vmatprep.subr.mxu0 0.0
        %1529 = vmatpush1.msra.mxu0 0.0
        %1530 = vmatprep.mubr.f32.mxu0 0.0
        %v1531 = vand.u32 %v428, 4294901760
        %v1532 = vsub.f32 %v428, %v1531
        %v1533 = vand.u32 %v1532, 4294901760
        %1534 = vmatmul.mubr.f32.gmra.mrb[0].mxu0 %v1533
        %v1535 = vpop.f32.mrb[0].mxu0
        %v1536 = vadd.f32 %v1432, %v1535
        %v1537 = vpop.f32.mrb[0].mxu0
        %v1538 = vadd.f32 %v1434, %v1537
        %1539 = vmatprep.mubr.f32.mxu0 0.0
        %v1540 = vand.u32 %v430, 4294901760
        %v1541 = vsub.f32 %v430, %v1540
        %v1542 = vand.u32 %v1541, 4294901760
        %1543 = vmatmul.mubr.f32.gmra.mrb[0].mxu0 %v1542
        %v1544 = vpop.f32.mrb[0].mxu0
        %v1545 = vadd.f32 %v1440, %v1544
        %v1546 = vpop.f32.mrb[0].mxu0
        %v1547 = vadd.f32 %v1442, %v1546
        %1548 = vmatprep.mubr.f32.mxu0 0.0
        %v1549 = vand.u32 %v432, 4294901760
        %v1550 = vsub.f32 %v432, %v1549
        %v1551 = vand.u32 %v1550, 4294901760
        %1552 = vmatmul.mubr.f32.gmra.mrb[0].mxu0 %v1551
        %v1553 = vpop.f32.mrb[0].mxu0
        %v1554 = vadd.f32 %v1448, %v1553
        %v1555 = vpop.f32.mrb[0].mxu0
        %v1556 = vadd.f32 %v1450, %v1555
        %1557 = vmatprep.mubr.f32.mxu0 0.0
        %v1558 = vand.u32 %v434, 4294901760
        %v1559 = vsub.f32 %v434, %v1558
        %v1560 = vand.u32 %v1559, 4294901760
        %1561 = vmatmul.mubr.f32.gmra.mrb[0].mxu0 %v1560
        %v1562 = vpop.f32.mrb[0].mxu0
        %v1563 = vadd.f32 %v1456, %v1562
        %v1564 = vpop.f32.mrb[0].mxu0
        %v1565 = vadd.f32 %v1458, %v1564
        %1566 = vdwg.mxu0
        %v1567 = vand.u32 %v398, 4294901760
        %v1568 = vsub.f32 %v398, %v1567
        %v1569 = vand.u32 %v1568, 4294901760
        %1570 = vmatprep.subr.mxu0 %v1569
        %v1571 = vand.u32 %v397, 4294901760
        %v1572 = vsub.f32 %v397, %v1571
        %v1573 = vand.u32 %v1572, 4294901760
        %1574 = vmatpush1.msra.mxu0 %v1573
        %v1575 = vand.u32 %v402, 4294901760
        %v1576 = vsub.f32 %v402, %v1575
        %v1577 = vand.u32 %v1576, 4294901760
        %1578 = vmatprep.subr.mxu0 %v1577
        %v1579 = vand.u32 %v401, 4294901760
        %v1580 = vsub.f32 %v401, %v1579
        %v1581 = vand.u32 %v1580, 4294901760
        %1582 = vmatpush1.msra.mxu0 %v1581
        %v1583 = vand.u32 %v447, 4294901760
        %v1584 = vsub.f32 %v447, %v1583
        %v1585 = vand.u32 %v1584, 4294901760
        %1586 = vmatprep.subr.mxu0 %v1585
        %v1587 = vand.u32 %v444, 4294901760
        %v1588 = vsub.f32 %v444, %v1587
        %v1589 = vand.u32 %v1588, 4294901760
        %1590 = vmatpush1.msra.mxu0 %v1589
        %1591 = vmatprep.subr.mxu0 0.0
        %1592 = vmatpush1.msra.mxu0 0.0
        %1593 = vmatprep.subr.mxu0 0.0
        %1594 = vmatpush1.msra.mxu0 0.0
        %1595 = vmatprep.subr.mxu0 0.0
        %1596 = vmatpush1.msra.mxu0 0.0
        %1597 = vmatprep.subr.mxu0 0.0
        %1598 = vmatpush1.msra.mxu0 0.0
        %1599 = vmatprep.subr.mxu0 0.0
        %1600 = vmatpush1.msra.mxu0 0.0
        %1601 = vmatprep.subr.mxu0 0.0
        %1602 = vmatpush1.msra.mxu0 0.0
        %1603 = vmatprep.subr.mxu0 0.0
        %1604 = vmatpush1.msra.mxu0 0.0
        %1605 = vmatprep.subr.mxu0 0.0
        %1606 = vmatpush1.msra.mxu0 0.0
        %1607 = vmatprep.subr.mxu0 0.0
        %1608 = vmatpush1.msra.mxu0 0.0
        %1609 = vmatprep.subr.mxu0 0.0
        %1610 = vmatpush1.msra.mxu0 0.0
        %1611 = vmatprep.subr.mxu0 0.0
        %1612 = vmatpush1.msra.mxu0 0.0
        %1613 = vmatprep.subr.mxu0 0.0
        %1614 = vmatpush1.msra.mxu0 0.0
        %1615 = vmatprep.subr.mxu0 0.0
        %1616 = vmatpush1.msra.mxu0 0.0
        %1617 = vmatprep.subr.mxu0 0.0
        %1618 = vmatpush1.msra.mxu0 0.0
        %1619 = vmatprep.subr.mxu0 0.0
        %1620 = vmatpush1.msra.mxu0 0.0
        %1621 = vmatprep.subr.mxu0 0.0
        %1622 = vmatpush1.msra.mxu0 0.0
        %1623 = vmatprep.subr.mxu0 0.0
        %1624 = vmatpush1.msra.mxu0 0.0
        %1625 = vmatprep.subr.mxu0 0.0
        %1626 = vmatpush1.msra.mxu0 0.0
        %1627 = vmatprep.subr.mxu0 0.0
        %1628 = vmatpush1.msra.mxu0 0.0
        %1629 = vmatprep.subr.mxu0 0.0
        %1630 = vmatpush1.msra.mxu0 0.0
        %1631 = vmatprep.subr.mxu0 0.0
        %1632 = vmatpush1.msra.mxu0 0.0
        %1633 = vmatprep.subr.mxu0 0.0
        %1634 = vmatpush1.msra.mxu0 0.0
        %1635 = vmatprep.subr.mxu0 0.0
        %1636 = vmatpush1.msra.mxu0 0.0
        %1637 = vmatprep.subr.mxu0 0.0
        %1638 = vmatpush1.msra.mxu0 0.0
        %1639 = vmatprep.subr.mxu0 0.0
        %1640 = vmatpush1.msra.mxu0 0.0
        %1641 = vmatprep.subr.mxu0 0.0
        %1642 = vmatpush1.msra.mxu0 0.0
        %1643 = vmatprep.subr.mxu0 0.0
        %1644 = vmatpush1.msra.mxu0 0.0
        %1645 = vmatprep.subr.mxu0 0.0
        %1646 = vmatpush1.msra.mxu0 0.0
        %1647 = vmatprep.subr.mxu0 0.0
        %1648 = vmatpush1.msra.mxu0 0.0
        %1649 = vmatprep.mubr.f32.mxu0 0.0
        %v1650 = vand.u32 %v428, 4294901760
        %1651 = vmatmul.mubr.f32.gmra.mrb[0].mxu0 %v1650
        %v1652 = vpop.f32.mrb[0].mxu0
        %v1653 = vadd.f32 %v1536, %v1652
        %v1654 = vpop.f32.mrb[0].mxu0
        %v1655 = vadd.f32 %v1538, %v1654
        %1656 = vmatprep.mubr.f32.mxu0 0.0
        %v1657 = vand.u32 %v430, 4294901760
        %1658 = vmatmul.mubr.f32.gmra.mrb[0].mxu0 %v1657
        %v1659 = vpop.f32.mrb[0].mxu0
        %v1660 = vadd.f32 %v1545, %v1659
        %v1661 = vpop.f32.mrb[0].mxu0
        %v1662 = vadd.f32 %v1547, %v1661
        %1663 = vmatprep.mubr.f32.mxu0 0.0
        %v1664 = vand.u32 %v432, 4294901760
        %1665 = vmatmul.mubr.f32.gmra.mrb[0].mxu0 %v1664
        %v1666 = vpop.f32.mrb[0].mxu0
        %v1667 = vadd.f32 %v1554, %v1666
        %v1668 = vpop.f32.mrb[0].mxu0
        %v1669 = vadd.f32 %v1556, %v1668
        %1670 = vmatprep.mubr.f32.mxu0 0.0
        %v1671 = vand.u32 %v434, 4294901760
        %1672 = vmatmul.mubr.f32.gmra.mrb[0].mxu0 %v1671
        %v1673 = vpop.f32.mrb[0].mxu0
        %v1674 = vadd.f32 %v1563, %v1673
        %v1675 = vpop.f32.mrb[0].mxu0
        %v1676 = vadd.f32 %v1565, %v1675
        %1677 = vdwg.mxu0
        %v1678 = vand.u32 %v398, 4294901760
        %1679 = vmatprep.subr.mxu0 %v1678
        %v1680 = vand.u32 %v397, 4294901760
        %1681 = vmatpush1.msra.mxu0 %v1680
        %v1682 = vand.u32 %v402, 4294901760
        %1683 = vmatprep.subr.mxu0 %v1682
        %v1684 = vand.u32 %v401, 4294901760
        %1685 = vmatpush1.msra.mxu0 %v1684
        %v1686 = vand.u32 %v447, 4294901760
        %1687 = vmatprep.subr.mxu0 %v1686
        %v1688 = vand.u32 %v444, 4294901760
        %1689 = vmatpush1.msra.mxu0 %v1688
        %1690 = vmatprep.subr.mxu0 0.0
        %1691 = vmatpush1.msra.mxu0 0.0
        %1692 = vmatprep.subr.mxu0 0.0
        %1693 = vmatpush1.msra.mxu0 0.0
        %1694 = vmatprep.subr.mxu0 0.0
        %1695 = vmatpush1.msra.mxu0 0.0
        %1696 = vmatprep.subr.mxu0 0.0
        %1697 = vmatpush1.msra.mxu0 0.0
        %1698 = vmatprep.subr.mxu0 0.0
        %1699 = vmatpush1.msra.mxu0 0.0
        %1700 = vmatprep.subr.mxu0 0.0
        %1701 = vmatpush1.msra.mxu0 0.0
        %1702 = vmatprep.subr.mxu0 0.0
        %1703 = vmatpush1.msra.mxu0 0.0
        %1704 = vmatprep.subr.mxu0 0.0
        %1705 = vmatpush1.msra.mxu0 0.0
        %1706 = vmatprep.subr.mxu0 0.0
        %1707 = vmatpush1.msra.mxu0 0.0
        %1708 = vmatprep.subr.mxu0 0.0
        %1709 = vmatpush1.msra.mxu0 0.0
        %1710 = vmatprep.subr.mxu0 0.0
        %1711 = vmatpush1.msra.mxu0 0.0
        %1712 = vmatprep.subr.mxu0 0.0
        %1713 = vmatpush1.msra.mxu0 0.0
        %1714 = vmatprep.subr.mxu0 0.0
        %1715 = vmatpush1.msra.mxu0 0.0
        %1716 = vmatprep.subr.mxu0 0.0
        %1717 = vmatpush1.msra.mxu0 0.0
        %1718 = vmatprep.subr.mxu0 0.0
        %1719 = vmatpush1.msra.mxu0 0.0
        %1720 = vmatprep.subr.mxu0 0.0
        %1721 = vmatpush1.msra.mxu0 0.0
        %1722 = vmatprep.subr.mxu0 0.0
        %1723 = vmatpush1.msra.mxu0 0.0
        %1724 = vmatprep.subr.mxu0 0.0
        %1725 = vmatpush1.msra.mxu0 0.0
        %1726 = vmatprep.subr.mxu0 0.0
        %1727 = vmatpush1.msra.mxu0 0.0
        %1728 = vmatprep.subr.mxu0 0.0
        %1729 = vmatpush1.msra.mxu0 0.0
        %1730 = vmatprep.subr.mxu0 0.0
        %1731 = vmatpush1.msra.mxu0 0.0
        %1732 = vmatprep.subr.mxu0 0.0
        %1733 = vmatpush1.msra.mxu0 0.0
        %1734 = vmatprep.subr.mxu0 0.0
        %1735 = vmatpush1.msra.mxu0 0.0
        %1736 = vmatprep.subr.mxu0 0.0
        %1737 = vmatpush1.msra.mxu0 0.0
        %1738 = vmatprep.subr.mxu0 0.0
        %1739 = vmatpush1.msra.mxu0 0.0
        %1740 = vmatprep.subr.mxu0 0.0
        %1741 = vmatpush1.msra.mxu0 0.0
        %1742 = vmatprep.subr.mxu0 0.0
        %1743 = vmatpush1.msra.mxu0 0.0
        %1744 = vmatprep.subr.mxu0 0.0
        %1745 = vmatpush1.msra.mxu0 0.0
        %1746 = vmatprep.subr.mxu0 0.0
        %1747 = vmatpush1.msra.mxu0 0.0
        %1748 = vmatprep.mubr.f32.mxu0 0.0
        %v1749 = vand.u32 %v428, 4294901760
        %1750 = vmatmul.mubr.f32.gmra.mrb[0].mxu0 %v1749
        %v1751 = vpop.f32.mrb[0].mxu0
        %v1752 = vadd.f32 %v1653, %v1751
        %v1753 = vpop.f32.mrb[0].mxu0
        %v1754 = vadd.f32 %v1655, %v1753
        %1755 = vmatprep.mubr.f32.mxu0 0.0
        %v1756 = vand.u32 %v430, 4294901760
        %1757 = vmatmul.mubr.f32.gmra.mrb[0].mxu0 %v1756
        %v1758 = vpop.f32.mrb[0].mxu0
        %v1759 = vadd.f32 %v1660, %v1758
        %v1760 = vpop.f32.mrb[0].mxu0
        %v1761 = vadd.f32 %v1662, %v1760
        %1762 = vmatprep.mubr.f32.mxu0 0.0
        %v1763 = vand.u32 %v432, 4294901760
        %1764 = vmatmul.mubr.f32.gmra.mrb[0].mxu0 %v1763
        %v1765 = vpop.f32.mrb[0].mxu0
        %v1766 = vadd.f32 %v1667, %v1765
        %v1767 = vpop.f32.mrb[0].mxu0
        %v1768 = vadd.f32 %v1669, %v1767
        %1769 = vmatprep.mubr.f32.mxu0 0.0
        %v1770 = vand.u32 %v434, 4294901760
        %1771 = vmatmul.mubr.f32.gmra.mrb[0].mxu0 %v1770
        %v1772 = vpop.f32.mrb[0].mxu0
        %v1773 = vadd.f32 %v1674, %v1772
        %v1774 = vpop.f32.mrb[0].mxu0
        %v1775 = vadd.f32 %v1676, %v1774
        %1776 = vdwg.mxu0
        %v1777 = vmul.f32 %v1088, 0.5
        %v1778 = vmul.f32 %v1090, 0.5
        %v1779 = vmul.f32 %v1752, 0.5
        %v1780 = vmul.f32 %v1754, 0.5
        %v1781 = vmul.f32 %v1095, 0.5
        %v1782 = vmul.f32 %v1097, 0.5
        %v1783 = vmul.f32 %v1759, 0.5
        %v1784 = vmul.f32 %v1761, 0.5
        %v1785 = vmul.f32 %v1102, 0.5
        %v1786 = vmul.f32 %v1104, 0.5
        %v1787 = vmul.f32 %v1766, 0.5
        %v1788 = vmul.f32 %v1768, 0.5
        %v1789 = vmul.f32 %v1109, 0.5
        %v1790 = vmul.f32 %v1111, 0.5
        %v1791 = vmul.f32 %v1773, 0.5
        %v1792 = vmul.f32 %v1775, 0.5
        %v1793 = vtanh.pop %v1777
        %v1794 = vtanh.pop %v1778
        %v1795 = vtanh.pop %v1779
        %v1796 = vtanh.pop %v1780
        %v1797 = vtanh.pop %v1781
        %v1798 = vtanh.pop %v1782
        %v1799 = vtanh.pop %v1783
        %v1800 = vtanh.pop %v1784
        %v1801 = vtanh.pop %v1785
        %v1802 = vtanh.pop %v1786
        %v1803 = vtanh.pop %v1787
        %v1804 = vtanh.pop %v1788
        %v1805 = vtanh.pop %v1789
        %v1806 = vtanh.pop %v1790
        %v1807 = vtanh.pop %v1791
        %v1808 = vtanh.pop %v1792
        %v1809 = vadd.f32 %v1793, 1.0
        %v1810 = vadd.f32 %v1794, 1.0
        %v1811 = vadd.f32 %v1795, 1.0
        %v1812 = vadd.f32 %v1796, 1.0
        %v1813 = vadd.f32 %v1797, 1.0
        %v1814 = vadd.f32 %v1798, 1.0
        %v1815 = vadd.f32 %v1799, 1.0
        %v1816 = vadd.f32 %v1800, 1.0
        %v1817 = vadd.f32 %v1801, 1.0
        %v1818 = vadd.f32 %v1802, 1.0
        %v1819 = vadd.f32 %v1803, 1.0
        %v1820 = vadd.f32 %v1804, 1.0
        %v1821 = vadd.f32 %v1805, 1.0
        %v1822 = vadd.f32 %v1806, 1.0
        %v1823 = vadd.f32 %v1807, 1.0
        %v1824 = vadd.f32 %v1808, 1.0
        %v1825 = vmul.f32 %v1809, 0.5
        %v1826 = vmul.f32 %v1810, 0.5
        %v1827 = vmul.f32 %v1811, 0.5
        %v1828 = vmul.f32 %v1812, 0.5
        %v1829 = vmul.f32 %v1813, 0.5
        %v1830 = vmul.f32 %v1814, 0.5
        %v1831 = vmul.f32 %v1815, 0.5
        %v1832 = vmul.f32 %v1816, 0.5
        %v1833 = vmul.f32 %v1817, 0.5
        %v1834 = vmul.f32 %v1818, 0.5
        %v1835 = vmul.f32 %v1819, 0.5
        %v1836 = vmul.f32 %v1820, 0.5
        %v1837 = vmul.f32 %v1821, 0.5
        %v1838 = vmul.f32 %v1822, 0.5
        %v1839 = vmul.f32 %v1823, 0.5
        %v1840 = vmul.f32 %v1824, 0.5
        %1841 = vset.pattern.permute.xlu0 21
        %1842 = vperm.xlu0 %1841, %v221
        %v1843 = vpop.permute.xlu0 %1842
        %1845 = vset.pattern.permute.xlu0 21
        %1846 = vperm.xlu0 %1845, %v222
        %v1847 = vpop.permute.xlu0 %1846
        %1849 = vset.pattern.permute.xlu0 21
        %1850 = vperm.xlu0 %1849, %v223
        %v1851 = vpop.permute.xlu0 %1850
        %1853 = vset.pattern.permute.xlu0 21
        %1854 = vperm.xlu0 %1853, %v224
        %v1855 = vpop.permute.xlu0 %1854
        %v1857 = vmul.f32 %v1843, %v1825
        %v1858 = vmul.f32 %v1843, %v1826
        %v1859 = vmul.f32 %v1843, %v1827
        %v1860 = vmul.f32 %v1843, %v1828
        %v1861 = vmul.f32 %v1847, %v1829
        %v1862 = vmul.f32 %v1847, %v1830
        %v1863 = vmul.f32 %v1847, %v1831
        %v1864 = vmul.f32 %v1847, %v1832
        %v1865 = vmul.f32 %v1851, %v1833
        %v1866 = vmul.f32 %v1851, %v1834
        %v1867 = vmul.f32 %v1851, %v1835
        %v1868 = vmul.f32 %v1851, %v1836
        %v1869 = vmul.f32 %v1855, %v1837
        %v1870 = vmul.f32 %v1855, %v1838
        %v1871 = vmul.f32 %v1855, %v1839
        %v1872 = vmul.f32 %v1855, %v1840
        %v1873 = vadd.f32 %v1857, %v1861
        %v1874 = vadd.f32 %v1873, %v1865
        %vm1875 = vcmask 1045504
        %v1876 = vsel %vm1875, %v1869, 0.0
        %v1877 = vadd.f32 %v1874, %v1876
        %v1878 = vrot.slane %v1877, 4
        %v1879 = vadd.f32 %v1877, %v1878
        %v1880 = vrot.slane %v1879, 2
        %v1881 = vadd.f32 %v1879, %v1880
        %v1882 = vrot.slane %v1881, 1
        %v1883 = vadd.f32 %v1881, %v1882
        %v1884 = vadd.f32 %v1858, %v1862
        %v1885 = vadd.f32 %v1884, %v1866
        %v1886 = vsel %vm1875, %v1870, 0.0
        %v1887 = vadd.f32 %v1885, %v1886
        %v1888 = vrot.slane %v1887, 4
        %v1889 = vadd.f32 %v1887, %v1888
        %v1890 = vrot.slane %v1889, 2
        %v1891 = vadd.f32 %v1889, %v1890
        %v1892 = vrot.slane %v1891, 1
        %v1893 = vadd.f32 %v1891, %v1892
        %v1894 = vadd.f32 %v1859, %v1863
        %v1895 = vadd.f32 %v1894, %v1867
        %v1896 = vsel %vm1875, %v1871, 0.0
        %v1897 = vadd.f32 %v1895, %v1896
        %v1898 = vrot.slane %v1897, 4
        %v1899 = vadd.f32 %v1897, %v1898
        %v1900 = vrot.slane %v1899, 2
        %v1901 = vadd.f32 %v1899, %v1900
        %v1902 = vrot.slane %v1901, 1
        %v1903 = vadd.f32 %v1901, %v1902
        %v1904 = vadd.f32 %v1860, %v1864
        %v1905 = vadd.f32 %v1904, %v1868
        %v1906 = vsel %vm1875, %v1872, 0.0
        %v1907 = vadd.f32 %v1905, %v1906
        %v1908 = vrot.slane %v1907, 4
        %v1909 = vadd.f32 %v1907, %v1908
        %v1910 = vrot.slane %v1909, 2
        %v1911 = vadd.f32 %v1909, %v1910
        %v1912 = vrot.slane %v1911, 1
        %v1913 = vadd.f32 %v1911, %v1912
        %v1914 = vstv %s225
        %v1915 = vadd.f32 %v1883, %v1914
        %v1916 = vadd.f32 %v1893, %v1914
        %v1917 = vadd.f32 %v1903, %v1914
        %v1918 = vadd.f32 %v1913, %v1914
        %v1919 = vsub.f32 1.0, %v227
        %v1920 = vmul.f32 %v227, %v1919
        %v1922 = vlaneseq
        %v1923 = vshrl.u32 %v1922, 7
        %v1924 = vsub.s32 0, %v1923
        %v1925 = vrot.slane %v1920, %v1924
        %v1926 = vlaneseq
        %v1927 = vshrl.u32 %v1926, 7
        %v1928 = vsub.s32 1, %v1927
        %v1929 = vrot.slane %v1920, %v1928
        %v1930 = vlaneseq
        %v1931 = vshrl.u32 %v1930, 7
        %v1932 = vsub.s32 2, %v1931
        %v1933 = vrot.slane %v1920, %v1932
        %v1934 = vlaneseq
        %v1935 = vshrl.u32 %v1934, 7
        %v1936 = vsub.s32 3, %v1935
        %v1937 = vrot.slane %v1920, %v1936
        %v1942 = vmul.f32 %v1915, %v1925
        %v1943 = vmul.f32 %v1916, %v1929
        %v1944 = vmul.f32 %v1917, %v1933
        %v1945 = vmul.f32 %v1918, %v1937
        %v1946 = vadd.f32 %v1942, 0.0
        %v1947 = vadd.f32 %v1943, 0.0
        %v1948 = vadd.f32 %v1944, 0.0
        %v1949 = vadd.f32 %v1945, 0.0
        %v1950 = vstv %s226
        %v1951 = vmul.f32 %v229, %v1950
        %v1952 = vmul.f32 %v1951, 0.5
        %v1953 = vtanh.pop %v1952
        %v1954 = vadd.f32 %v1953, 1.0
        %v1955 = vmul.f32 %v1954, 0.5
        %v1956 = vsub.f32 %v1955, 0.5
        %v1961 = vcombine.low %v1946, %v1947
        %v1962 = vcombine.low %v1948, %v1949
        %v1964 = vunpack.c.l.s4 1966171168
        %v1965 = vunpack.c.0.s8 %v1964
        %v1966 = vlaneseq
        %v1967 = vshrl.u32 %v1966, 7
        %v1968 = vsub.s32 %v1965, %v1967
        %v1969 = vrot.slane %v1961, %v1968
        %v1971 = vunpack.c.l.s4 1966171168
        %v1972 = vunpack.c.0.s8 %v1971
        %v1973 = vlaneseq
        %v1974 = vshrl.u32 %v1973, 7
        %v1975 = vsub.s32 %v1972, %v1974
        %v1976 = vrot.slane %v1962, %v1975
        %v1977 = vcombine.low %v1969, %v1976
        %v1979 = vunpack.c.l.s4 1966171168
        %v1980 = vunpack.c.0.s8 %v1979
        %v1981 = vlaneseq
        %v1982 = vshrl.u32 %v1981, 7
        %v1983 = vsub.s32 %v1980, %v1982
        %v1984 = vrot.slane %v1977, %v1983
        %v1986 = vmul.f32 %v1956, %v1984
        %v1987 = vmul.f32 %v227, 3.1415927
        %v1988 = vand.u32 2147483647, %v1987
        %vm1989 = vcmp.le.f32.partialorder %v1988, 0.7853982
        %vm1990 = vcmp.lt.s32.totalorder %v1987, 0
        %v1991 = vand.u32 %v1987, 2139095040
        %v1992 = vshrl.u32 %v1991, 23
        %v1993 = vsub.s32 %v1992, 127
        %v1994 = vand.u32 2147483647, %v1987
        %v1995 = vand.u32 %v1994, 8388607
        %v1996 = vor.u32 %v1995, 8388608
        %v1997 = vsub.s32 0, %v1996
        %v1998 = vadd.s32 %v1993, 1
        %vm1999 = vcmp.gt.s32.totalorder %v1998, 0
        %v2000 = vsel %vm1999, %v1998, 0
        %v2001 = vshrl.u32 %v2000, 5
        %v2002 = vand.u32 %v2000, 31
        %v2003 = vsub.s32 32, %v2002
        %v2004 = vshrl.u32 683565275, %v2003
        %v2005 = vshll.u32 683565275, %v2002
        %v2006 = vshrl.u32 2475754826, %v2003
        %v2007 = vor.u32 %v2005, %v2006
        %v2008 = vshll.u32 2475754826, %v2002
        %v2009 = vshrl.u32 2131351028, %v2003
        %v2010 = vor.u32 %v2008, %v2009
        %v2011 = vshll.u32 2131351028, %v2002
        %v2012 = vshrl.u32 2102212464, %v2003
        %v2013 = vor.u32 %v2011, %v2012
        %v2014 = vshll.u32 2102212464, %v2002
        %v2015 = vshrl.u32 920167782, %v2003
        %v2016 = vor.u32 %v2014, %v2015
        %v2017 = vshll.u32 920167782, %v2002
        %v2018 = vshrl.u32 1326507024, %v2003
        %v2019 = vor.u32 %v2017, %v2018
        %vm2020 = vcmp.lt.s32.totalorder %v2001, 1
        %vm2021 = vcmp.lt.s32.totalorder %v2001, 2
        %vm2022 = vcmp.lt.s32.totalorder %v2001, 3
        %vm2023 = vcmp.lt.s32.totalorder %v2001, 4
        %v2024 = vsel %vm2020, %v2004, %v2007
        %v2025 = vsel %vm2023, %v2013, 2102212464
        %v2026 = vsel %vm2022, %v2010, %v2025
        %v2027 = vsel %vm2021, %v2024, %v2026
        %v2028 = vsel %vm2020, %v2007, %v2010
        %v2029 = vsel %vm2023, %v2016, 920167782
        %v2030 = vsel %vm2022, %v2013, %v2029
        %v2031 = vsel %vm2021, %v2028, %v2030
        %v2032 = vsel %vm2020, %v2010, %v2013
        %v2033 = vsel %vm2023, %v2019, 1326507024
        %v2034 = vsel %vm2022, %v2016, %v2033
        %v2035 = vsel %vm2021, %v2032, %v2034
        %v2036 = vshll.u32 %v1996, 8
        %v2037 = vmul.u32.u64.compose %v2036, %v2035
        %v2038 = vextract.low.u32 %v2037
        %v2039 = vextract.high.u32 %v2037
        %v2040 = vmul.u32.u64.compose %v2036, %v2031
        %v2041 = vextract.low.u32 %v2040
        %v2042 = vextract.high.u32 %v2040
        %v2043 = vmul.u32 %v2036, %v2027
        %v2044 = vadd.s32 %v2039, %v2041
        %vm2045 = vc.u32 %v2039, %v2041
        %v2046 = vadd.s32 %v2042, 1
        %v2047 = vsel %vm2045, %v2046, %v2042
        %v2048 = vadd.s32 %v2043, %v2047
        %v2049 = vadd.s32 %v2048, 536870912
        %v2050 = vshrl.u32 %v2049, 30
        %v2051 = vshll.u32 %v2050, 30
        %v2052 = vsub.s32 %v2048, %v2051
        %vm2053 = vcmp.lt.s32.totalorder %v2052, 0
        %v2054 = vsub.s32 0, %v2052
        %v2055 = vsel %vm2053, %v2054, %v2052
        %v2056 = vclz %v2055
        %v2057 = vsub.s32 %v2056, 2
        %vm2058 = vcmp.gt.s32.totalorder 0, %v2057
        %v2059 = vsel %vm2058, 0, %v2057
        %v2060 = vsub.s32 32, %v2059
        %v2061 = vshll.u32 %v2052, %v2059
        %v2062 = vshrl.u32 %v2044, %v2060
        %v2063 = vor.u32 %v2061, %v2062
        %v2064 = vsub.s32 4294967266, %v2059
        %v2065 = vadd.s32 %v2064, 127
        %v2066 = vshll.u32 %v2065, 23
        %v2067 = vor.u32 4788187, %v2066
        %v2068 = vand.u32 2147483647, %v2067
        %v2070 = vcvt.s32.f32 %v2063
        %v2071 = vmul.f32 %v2070, %v2068
        %v2072 = vxor.u32 %v2071, 2147483648
        %v2073 = vsel %vm1990, %v2072, %v2071
        %v2074 = vsub.s32 4, %v2050
        %v2075 = vsel %vm1990, %v2074, %v2050
        %v2076 = vsel %vm1989, %v1987, %v2073
        %v2077 = vsel %vm1989, 0, %v2075
        %v2078 = vcosq.f32.pop %v2076
        %v2079 = vsinq.f32.pop %v2076
        %vm2080 = vweird.f32 %v1987
        %v2081 = vadd.s32 %v2077, 3
        %v2082 = vand.u32 %v2081, 3
        %vm2083 = vcmp.lt.s32.totalorder %v2082, 2
        %vm2084 = vcmp.eq.s32.totalorder %v2082, 0
        %v2085 = vxor.u32 %v2079, 2147483648
        %v2086 = vsel %vm2084, %v2078, %v2085
        %vm2087 = vcmp.eq.s32.totalorder %v2082, 2
        %v2088 = vxor.u32 %v2078, 2147483648
        %v2089 = vsel %vm2087, %v2088, %v2079
        %v2090 = vsel %vm2083, %v2086, %v2089
        %v2091 = vsel %vm2080, nan, %v2090
        %v2092 = vadd.f32 %v1986, %v2091
        %v2093 = vlaneseq
        %vm2094 = vcmp.ge.s32.totalorder %v2093, 0
        %vm2095 = vcmp.lt.s32.totalorder %v2093, 512
        %vm2096 = vmand %vm2094, %vm2095
        %2097 = vst.msk [vmem:[%s215] sm:$0xf] %vm2096, %v2092
        %s2098 = sand.u32 %s98, 1
        %s2099 = scalar_lea.sflag [#allocation4], %s2098
        %s2100 = sand.u32 %s98, 1
        %s2101 = smul.addr %s2100, 4
        %s2102 = scalar_lea.vmem [#allocation9], %s2101
        // Predicated region
        $region45: #{tpu_custom_call.1} parent=31 // pred_check
          %p2103 = pneg %p108
        $region46: #{tpu_custom_call.1} parent=31 // pred_check_branch
          %2105 = sbr.rel (%p2103) target = $region48
        $region47: #{tpu_custom_call.1} parent=31 // pred_region
          %s2106 = smul.u32 4, %s22
          %s2108 = ssub.s32 64, 64
          %2109 = vsyncadd %s2099, %s2108
          %s2110 = smul.addr %s2106, 16
          %s2111 = scalar_lea.hbm %s3, %s2110
          %s2113 = sshll.u32 %s2102, 4
          %s2114 = int_to_ptr.vmem [resolvable:$true] %s2113
          %2116 = dma.vmem_to_hbm [thread:$0]  %s2114, 64, %s2111, %s2099
        $region48: #{tpu_custom_call.1} parent=31 // pred_fallthru
          _
      $region32: #{tpu_custom_call.1} parent=5 // pred_fallthru
        _
      %p2117 = scmp.le.s32.totalorder 2, %s17
      // Predicated region
      $region49: #{tpu_custom_call.1} parent=5 // pred_check
        %p2118 = pneg %p2117
      $region50: #{tpu_custom_call.1} parent=5 // pred_check_branch
        %2120 = sbr.rel (%p2118) target = $region52
      $region51: #{tpu_custom_call.1} parent=5 // pred_region
        %s2121 = ssub.s32 %s17, 2
        // Predicated region
        $region53: #{tpu_custom_call.1} parent=51 // pred_check
          %p2122 = pneg %p114
        $region54: #{tpu_custom_call.1} parent=51 // pred_check_branch
          %2124 = sbr.rel (%p2122) target = $region56
        $region55: #{tpu_custom_call.1} parent=51 // pred_region
          %s2125 = sand.u32 %s99, 1
          %s2126 = scalar_lea.sflag [#allocation4], %s2125
          %s2127 = sand.u32 %s99, 1
          %s2128 = smul.addr %s2127, 4
          %s2129 = scalar_lea.vmem [#allocation9], %s2128
          %2130 = dma.done %s2126, 64
        $region56: #{tpu_custom_call.1} parent=51 // pred_fallthru
          _
      $region52: #{tpu_custom_call.1} parent=5 // pred_fallthru
        _
    $region6: #{tpu_custom_call.1} parent=1 // loop_footer
      %s21 = sadd.s32 1, %s17
    $region7: #{tpu_custom_call.1} parent=1 // loop_footer_branch
      %16 = sbr.rel target = $region3
    $region8: #{tpu_custom_call.1} parent=1 // loop_exit
      _
    %2131 = vsyncpa [#allocation3], 1
    %s2132 = scalar_lea.sflag [#allocation3], 1
    %2133 = vsyncpa %s2132, 1
    %2134 = vsyncpa [#allocation7], 1
    %2135 = vsyncpa [#allocation4], 1
    %s2136 = scalar_lea.sflag [#allocation4], 1
    %2137 = vsyncpa %s2136, 1
    %2138 = vsyncpa [#allocation5], 1
    %s2139 = scalar_lea.sflag [#allocation5], 1
    %2140 = vsyncpa %s2139, 1

</llo_original>
